<compile_context>
chip_gen: v7x
topology: tpu7x:2x2x1
jax: 0.10.0
libtpu: 0.0.40
codegen_flags: <defaults>
</compile_context>

<pallas_src>
import math

import jax
import jax.numpy as jnp
from jax.experimental import pallas as pl
from jax.experimental.pallas import tpu as pltpu

LANE = 128  # TPU lane width: keep the channel (last) axis a multiple of this.


def _round_up(n, m):
    return ((n + m - 1) // m) * m


def conv_kernel(x_ref, w_ref, b_ref, o_ref):
    """One batch element of y = conv2d(x, w) + b (cross-correlation, NHWC).

    x_ref: (1, H_pad, W_pad, C_in_p)   zero-padded input, f32
    w_ref: (kH, kW, C_in_p, C_out_p)   pre-scaled weights, bf16 (VMEM-resident)
    b_ref: (1, C_out_p)                bias, f32
    o_ref: (1, H_out, W_out, C_out_p)  output, f32
    """
    _, H_out, W_out, C_out = o_ref.shape
    kH, kW, C_in, _ = w_ref.shape

    x = x_ref[0]        # (H_pad, W_pad, C_in_p)  f32
    w = w_ref[...]      # (kH, kW, C_in_p, C_out_p)  bf16
    b = b_ref[...]      # (1, C_out_p)  f32

    # Sum of kH*kW shifted matmuls, f32 accumulation on the MXU.
    acc = jnp.zeros((H_out * W_out, C_out), jnp.float32)
    for kh in range(kH):            # static taps: unrolled at trace time
        for kw in range(kW):
            patch = x[kh:kh + H_out, kw:kw + W_out, :]        # shifted window
            patch = patch.reshape(H_out * W_out, C_in)
            acc = acc + jnp.dot(
                patch.astype(jnp.bfloat16),                   # bf16 MXU inputs
                w[kh, kw],
                preferred_element_type=jnp.float32)           # f32 accumulate
    acc = acc + b                                             # f32 bias add
    o_ref[...] = acc.reshape(1, H_out, W_out, C_out).astype(o_ref.dtype)


def equalized_conv2d(x, weight, bias, padding=0):
    """EqualizedConv2d forward.

    x:      (B, C_in, H, W)            NCHW (torch layout)
    weight: (C_out, C_in, kH, kW)      raw (unscaled) weight
    bias:   (C_out,)
    """
    B, C_in, H, W = x.shape
    C_out, c_in_w, kH, kW = weight.shape
    assert c_in_w == C_in
    H_out = H + 2 * padding - kH + 1
    W_out = W + 2 * padding - kW + 1
    H_pad = H + 2 * padding
    W_pad = W + 2 * padding

    # Equalized-LR gain from the *unpadded* fan-in; folded into the weights
    # exactly once here (perf review: no per-step rescale in the kernel).
    c = 1.0 / math.sqrt(C_in * kH * kW)

    # Lane-dense channel axes (last dim a multiple of 128 -> unmasked stores).
    C_in_p = _round_up(C_in, LANE)
    C_out_p = _round_up(C_out, LANE)

    # NCHW -> NHWC, zero-pad spatially (conv padding) and on channels (lanes).
    x_nhwc = jnp.transpose(x, (0, 2, 3, 1)).astype(jnp.float32)
    x_pad = jnp.pad(
        x_nhwc,
        ((0, 0), (padding, padding), (padding, padding), (0, C_in_p - C_in)))

    # (C_out, C_in, kH, kW) -> (kH, kW, C_in_p, C_out_p), pre-scaled, bf16.
    w_hwio = jnp.transpose(weight.astype(jnp.float32) * c, (2, 3, 1, 0))
    w_hwio = jnp.pad(
        w_hwio,
        ((0, 0), (0, 0), (0, C_in_p - C_in), (0, C_out_p - C_out))
    ).astype(jnp.bfloat16)

    # Bias as a single lane-dense (1, C_out_p) f32 slab.
    b_pad = jnp.pad(bias.astype(jnp.float32), (0, C_out_p - C_out))[None, :]

    flops = 2 * B * H_out * W_out * kH * kW * C_in_p * C_out_p
    bytes_accessed = (x_pad.size * 4 + w_hwio.size * 2 + b_pad.size * 4
                      + B * H_out * W_out * C_out_p * 4)

    out_p = pl.pallas_call(
        conv_kernel,
        out_shape=jax.ShapeDtypeStruct((B, H_out, W_out, C_out_p), jnp.float32),
        grid_spec=pltpu.PrefetchScalarGridSpec(
            num_scalar_prefetch=0,
            grid=(B,),
            in_specs=[
                # Activations: one image per grid step, auto double-buffered.
                pl.BlockSpec((1, H_pad, W_pad, C_in_p), lambda b: (b, 0, 0, 0)),
                # Weights / bias: constant index_map -> stay VMEM-resident.
                pl.BlockSpec((kH, kW, C_in_p, C_out_p), lambda b: (0, 0, 0, 0)),
                pl.BlockSpec((1, C_out_p), lambda b: (0, 0)),
            ],
            out_specs=pl.BlockSpec((1, H_out, W_out, C_out_p),
                                   lambda b: (b, 0, 0, 0)),
        ),
        compiler_params=pltpu.CompilerParams(
            # Batch axis is embarrassingly parallel -> shards across v7x's 2 TCs
            # (harmless on v5e/v6e single-TC chips).
            dimension_semantics=("parallel",),
        ),
        cost_estimate=pl.CostEstimate(
            flops=flops, transcendentals=0, bytes_accessed=bytes_accessed),
    )(x_pad, w_hwio, b_pad)

    # Strip the lane padding and return NCHW to match the torch module.
    out = out_p[:, :, :, :C_out]
    return jnp.transpose(out, (0, 3, 1, 2))


def reference_forward(x, weight, bias, padding):
    """Pure-JAX f32 reference mirroring the PyTorch EqualizedConv2d."""
    c = 1.0 / math.sqrt(weight.shape[1] * weight.shape[2] * weight.shape[3])
    out = jax.lax.conv_general_dilated(
        x.astype(jnp.float32),
        (weight * c).astype(jnp.float32),
        window_strides=(1, 1),
        padding=[(padding, padding), (padding, padding)],
        dimension_numbers=("NCHW", "OIHW", "NCHW"))
    return out + bias[None, :, None, None]


if __name__ == "__main__":
    # Small shapes consistent with EqualizedConv2d(in=4, out=8, k=3, padding=1).
    B, C_in, H, W = 2, 4, 16, 16
    C_out, k, padding = 8, 3, 1

    key = jax.random.PRNGKey(0)
    kx, kw = jax.random.split(key)
    x = jax.random.normal(kx, (B, C_in, H, W), dtype=jnp.float32)
    # EqualizedWeight: raw weight ~ N(0,1); bias initialized to ones (module spec).
    weight = jax.random.normal(kw, (C_out, C_in, k, k), dtype=jnp.float32)
    bias = jnp.ones((C_out,), dtype=jnp.float32)

    out = equalized_conv2d(x, weight, bias, padding=padding)
    out = jax.block_until_ready(out)

    ref = reference_forward(x, weight, bias, padding)
    assert out.shape == (B, C_out, H + 2 * padding - k + 1,
                         W + 2 * padding - k + 1)
    # bf16 matmul inputs with f32 accumulation: loosen tolerance vs f32 reference.
    assert jnp.allclose(out, ref, atol=5e-2, rtol=5e-2), "mismatch vs reference"

    print("KERNEL_OK")
</pallas_src>

<mosaic_0001>
module attributes {stable_mosaic.version = 11 : i64} {
  func.func @conv_kernel(%arg0: i32, %arg1: memref<1x18x18x128xf32, #tpu.memory_space<vmem>>, %arg2: memref<3x3x128x128xbf16, #tpu.memory_space<vmem>>, %arg3: memref<1x128xf32, #tpu.memory_space<vmem>>, %arg4: memref<1x16x16x128xf32, #tpu.memory_space<vmem>>) attributes {dimension_semantics = [#tpu.dimension_semantics<parallel>], iteration_bounds = array<i64: 2>, scalar_prefetch = 0 : i64, scratch_operands = 0 : i64, tpu.core_type = #tpu.core_type<tc>, window_params = [{transform_indices = @transform_0, window_bounds = array<i64: 1, 18, 18, 128>}, {pipeline_mode = #tpu.pipeline_mode<synchronous>, transform_indices = @transform_1, window_bounds = array<i64: 3, 3, 128, 128>}, {pipeline_mode = #tpu.pipeline_mode<synchronous>, transform_indices = @transform_2, window_bounds = array<i64: 1, 128>}, {transform_indices = @transform_3, window_bounds = array<i64: 1, 16, 16, 128>}]} {
    %c0 = arith.constant 0 : index
    %c0_0 = arith.constant 0 : index
    %c0_1 = arith.constant 0 : index
    %c0_2 = arith.constant 0 : index
    %0 = vector.load %arg1[%c0, %c0_0, %c0_1, %c0_2] : memref<1x18x18x128xf32, #tpu.memory_space<vmem>>, vector<1x18x18x128xf32>
    %1 = vector.shape_cast %0 : vector<1x18x18x128xf32> to vector<18x18x128xf32>
    %c0_3 = arith.constant 0 : index
    %c0_4 = arith.constant 0 : index
    %c0_5 = arith.constant 0 : index
    %c0_6 = arith.constant 0 : index
    %2 = vector.load %arg2[%c0_3, %c0_4, %c0_5, %c0_6] : memref<3x3x128x128xbf16, #tpu.memory_space<vmem>>, vector<3x3x128x128xbf16>
    %c0_7 = arith.constant 0 : index
    %c0_8 = arith.constant 0 : index
    %3 = vector.load %arg3[%c0_7, %c0_8] : memref<1x128xf32, #tpu.memory_space<vmem>>, vector<1x128xf32>
    %cst = arith.constant 0.000000e+00 : f32
    %4 = vector.broadcast %cst : f32 to vector<256x128xf32>
    %5 = vector.extract_strided_slice %1 {offsets = [0, 0, 0], sizes = [16, 16, 128], strides = [1, 1, 1]} : vector<18x18x128xf32> to vector<16x16x128xf32>
    %6 = vector.shape_cast %5 : vector<16x16x128xf32> to vector<256x128xf32>
    %7 = arith.truncf %6 : vector<256x128xf32> to vector<256x128xbf16>
    %8 = vector.extract_strided_slice %2 {offsets = [0, 0, 0, 0], sizes = [1, 1, 128, 128], strides = [1, 1, 1, 1]} : vector<3x3x128x128xbf16> to vector<1x1x128x128xbf16>
    %9 = vector.shape_cast %8 : vector<1x1x128x128xbf16> to vector<128x128xbf16>
    %cst_9 = arith.constant dense<0.000000e+00> : vector<256x128xf32>
    %10 = tpu.matmul %7, %9, %cst_9 {dimension_numbers = #tpu.dot_dimension_numbers<[1], [0], [0], [1], [0, 0, 1, 1], [], []>} : vector<256x128xbf16>, vector<128x128xbf16>, vector<256x128xf32> -> vector<256x128xf32>
    %11 = arith.addf %4, %10 : vector<256x128xf32>
    %12 = vector.extract_strided_slice %1 {offsets = [0, 1, 0], sizes = [16, 16, 128], strides = [1, 1, 1]} : vector<18x18x128xf32> to vector<16x16x128xf32>
    %13 = vector.shape_cast %12 : vector<16x16x128xf32> to vector<256x128xf32>
    %14 = arith.truncf %13 : vector<256x128xf32> to vector<256x128xbf16>
    %15 = vector.extract_strided_slice %2 {offsets = [0, 1, 0, 0], sizes = [1, 1, 128, 128], strides = [1, 1, 1, 1]} : vector<3x3x128x128xbf16> to vector<1x1x128x128xbf16>
    %16 = vector.shape_cast %15 : vector<1x1x128x128xbf16> to vector<128x128xbf16>
    %cst_10 = arith.constant dense<0.000000e+00> : vector<256x128xf32>
    %17 = tpu.matmul %14, %16, %cst_10 {dimension_numbers = #tpu.dot_dimension_numbers<[1], [0], [0], [1], [0, 0, 1, 1], [], []>} : vector<256x128xbf16>, vector<128x128xbf16>, vector<256x128xf32> -> vector<256x128xf32>
    %18 = arith.addf %11, %17 : vector<256x128xf32>
    %19 = vector.extract_strided_slice %1 {offsets = [0, 2, 0], sizes = [16, 16, 128], strides = [1, 1, 1]} : vector<18x18x128xf32> to vector<16x16x128xf32>
    %20 = vector.shape_cast %19 : vector<16x16x128xf32> to vector<256x128xf32>
    %21 = arith.truncf %20 : vector<256x128xf32> to vector<256x128xbf16>
    %22 = vector.extract_strided_slice %2 {offsets = [0, 2, 0, 0], sizes = [1, 1, 128, 128], strides = [1, 1, 1, 1]} : vector<3x3x128x128xbf16> to vector<1x1x128x128xbf16>
    %23 = vector.shape_cast %22 : vector<1x1x128x128xbf16> to vector<128x128xbf16>
    %cst_11 = arith.constant dense<0.000000e+00> : vector<256x128xf32>
    %24 = tpu.matmul %21, %23, %cst_11 {dimension_numbers = #tpu.dot_dimension_numbers<[1], [0], [0], [1], [0, 0, 1, 1], [], []>} : vector<256x128xbf16>, vector<128x128xbf16>, vector<256x128xf32> -> vector<256x128xf32>
    %25 = arith.addf %18, %24 : vector<256x128xf32>
    %26 = vector.extract_strided_slice %1 {offsets = [1, 0, 0], sizes = [16, 16, 128], strides = [1, 1, 1]} : vector<18x18x128xf32> to vector<16x16x128xf32>
    %27 = vector.shape_cast %26 : vector<16x16x128xf32> to vector<256x128xf32>
    %28 = arith.truncf %27 : vector<256x128xf32> to vector<256x128xbf16>
    %29 = vector.extract_strided_slice %2 {offsets = [1, 0, 0, 0], sizes = [1, 1, 128, 128], strides = [1, 1, 1, 1]} : vector<3x3x128x128xbf16> to vector<1x1x128x128xbf16>
    %30 = vector.shape_cast %29 : vector<1x1x128x128xbf16> to vector<128x128xbf16>
    %cst_12 = arith.constant dense<0.000000e+00> : vector<256x128xf32>
    %31 = tpu.matmul %28, %30, %cst_12 {dimension_numbers = #tpu.dot_dimension_numbers<[1], [0], [0], [1], [0, 0, 1, 1], [], []>} : vector<256x128xbf16>, vector<128x128xbf16>, vector<256x128xf32> -> vector<256x128xf32>
    %32 = arith.addf %25, %31 : vector<256x128xf32>
    %33 = vector.extract_strided_slice %1 {offsets = [1, 1, 0], sizes = [16, 16, 128], strides = [1, 1, 1]} : vector<18x18x128xf32> to vector<16x16x128xf32>
    %34 = vector.shape_cast %33 : vector<16x16x128xf32> to vector<256x128xf32>
    %35 = arith.truncf %34 : vector<256x128xf32> to vector<256x128xbf16>
    %36 = vector.extract_strided_slice %2 {offsets = [1, 1, 0, 0], sizes = [1, 1, 128, 128], strides = [1, 1, 1, 1]} : vector<3x3x128x128xbf16> to vector<1x1x128x128xbf16>
    %37 = vector.shape_cast %36 : vector<1x1x128x128xbf16> to vector<128x128xbf16>
    %cst_13 = arith.constant dense<0.000000e+00> : vector<256x128xf32>
    %38 = tpu.matmul %35, %37, %cst_13 {dimension_numbers = #tpu.dot_dimension_numbers<[1], [0], [0], [1], [0, 0, 1, 1], [], []>} : vector<256x128xbf16>, vector<128x128xbf16>, vector<256x128xf32> -> vector<256x128xf32>
    %39 = arith.addf %32, %38 : vector<256x128xf32>
    %40 = vector.extract_strided_slice %1 {offsets = [1, 2, 0], sizes = [16, 16, 128], strides = [1, 1, 1]} : vector<18x18x128xf32> to vector<16x16x128xf32>
    %41 = vector.shape_cast %40 : vector<16x16x128xf32> to vector<256x128xf32>
    %42 = arith.truncf %41 : vector<256x128xf32> to vector<256x128xbf16>
    %43 = vector.extract_strided_slice %2 {offsets = [1, 2, 0, 0], sizes = [1, 1, 128, 128], strides = [1, 1, 1, 1]} : vector<3x3x128x128xbf16> to vector<1x1x128x128xbf16>
    %44 = vector.shape_cast %43 : vector<1x1x128x128xbf16> to vector<128x128xbf16>
    %cst_14 = arith.constant dense<0.000000e+00> : vector<256x128xf32>
    %45 = tpu.matmul %42, %44, %cst_14 {dimension_numbers = #tpu.dot_dimension_numbers<[1], [0], [0], [1], [0, 0, 1, 1], [], []>} : vector<256x128xbf16>, vector<128x128xbf16>, vector<256x128xf32> -> vector<256x128xf32>
    %46 = arith.addf %39, %45 : vector<256x128xf32>
    %47 = vector.extract_strided_slice %1 {offsets = [2, 0, 0], sizes = [16, 16, 128], strides = [1, 1, 1]} : vector<18x18x128xf32> to vector<16x16x128xf32>
    %48 = vector.shape_cast %47 : vector<16x16x128xf32> to vector<256x128xf32>
    %49 = arith.truncf %48 : vector<256x128xf32> to vector<256x128xbf16>
    %50 = vector.extract_strided_slice %2 {offsets = [2, 0, 0, 0], sizes = [1, 1, 128, 128], strides = [1, 1, 1, 1]} : vector<3x3x128x128xbf16> to vector<1x1x128x128xbf16>
    %51 = vector.shape_cast %50 : vector<1x1x128x128xbf16> to vector<128x128xbf16>
    %cst_15 = arith.constant dense<0.000000e+00> : vector<256x128xf32>
    %52 = tpu.matmul %49, %51, %cst_15 {dimension_numbers = #tpu.dot_dimension_numbers<[1], [0], [0], [1], [0, 0, 1, 1], [], []>} : vector<256x128xbf16>, vector<128x128xbf16>, vector<256x128xf32> -> vector<256x128xf32>
    %53 = arith.addf %46, %52 : vector<256x128xf32>
    %54 = vector.extract_strided_slice %1 {offsets = [2, 1, 0], sizes = [16, 16, 128], strides = [1, 1, 1]} : vector<18x18x128xf32> to vector<16x16x128xf32>
    %55 = vector.shape_cast %54 : vector<16x16x128xf32> to vector<256x128xf32>
    %56 = arith.truncf %55 : vector<256x128xf32> to vector<256x128xbf16>
    %57 = vector.extract_strided_slice %2 {offsets = [2, 1, 0, 0], sizes = [1, 1, 128, 128], strides = [1, 1, 1, 1]} : vector<3x3x128x128xbf16> to vector<1x1x128x128xbf16>
    %58 = vector.shape_cast %57 : vector<1x1x128x128xbf16> to vector<128x128xbf16>
    %cst_16 = arith.constant dense<0.000000e+00> : vector<256x128xf32>
    %59 = tpu.matmul %56, %58, %cst_16 {dimension_numbers = #tpu.dot_dimension_numbers<[1], [0], [0], [1], [0, 0, 1, 1], [], []>} : vector<256x128xbf16>, vector<128x128xbf16>, vector<256x128xf32> -> vector<256x128xf32>
    %60 = arith.addf %53, %59 : vector<256x128xf32>
    %61 = vector.extract_strided_slice %1 {offsets = [2, 2, 0], sizes = [16, 16, 128], strides = [1, 1, 1]} : vector<18x18x128xf32> to vector<16x16x128xf32>
    %62 = vector.shape_cast %61 : vector<16x16x128xf32> to vector<256x128xf32>
    %63 = arith.truncf %62 : vector<256x128xf32> to vector<256x128xbf16>
    %64 = vector.extract_strided_slice %2 {offsets = [2, 2, 0, 0], sizes = [1, 1, 128, 128], strides = [1, 1, 1, 1]} : vector<3x3x128x128xbf16> to vector<1x1x128x128xbf16>
    %65 = vector.shape_cast %64 : vector<1x1x128x128xbf16> to vector<128x128xbf16>
    %cst_17 = arith.constant dense<0.000000e+00> : vector<256x128xf32>
    %66 = tpu.matmul %63, %65, %cst_17 {dimension_numbers = #tpu.dot_dimension_numbers<[1], [0], [0], [1], [0, 0, 1, 1], [], []>} : vector<256x128xbf16>, vector<128x128xbf16>, vector<256x128xf32> -> vector<256x128xf32>
    %67 = arith.addf %60, %66 : vector<256x128xf32>
    %68 = vector.broadcast %3 : vector<1x128xf32> to vector<256x128xf32>
    %69 = arith.addf %67, %68 : vector<256x128xf32>
    %70 = vector.shape_cast %69 : vector<256x128xf32> to vector<1x16x16x128xf32>
    %c0_18 = arith.constant 0 : index
    %c0_19 = arith.constant 0 : index
    %c0_20 = arith.constant 0 : index
    %c0_21 = arith.constant 0 : index
    %71 = vector.load %arg4[%c0_18, %c0_19, %c0_20, %c0_21] : memref<1x16x16x128xf32, #tpu.memory_space<vmem>>, vector<1x16x16x128xf32>
    tpu.vector_store %arg4[%c0_18, %c0_19, %c0_20, %c0_21], %70 {strides = array<i32>} : memref<1x16x16x128xf32, #tpu.memory_space<vmem>>, vector<1x16x16x128xf32>,
    return
  }
  func.func @transform_0(%arg0: i32) -> (i32, i32, i32, i32) {
    %c0_i32 = arith.constant 0 : i32
    %c0_i32_0 = arith.constant 0 : i32
    %c0_i32_1 = arith.constant 0 : i32
    %c0_i32_2 = arith.constant 0 : i32
    return %arg0, %c0_i32, %c0_i32_0, %c0_i32_1 : i32, i32, i32, i32
  }
  func.func @transform_1(%arg0: i32) -> (i32, i32, i32, i32) {
    %c0_i32 = arith.constant 0 : i32
    %c0_i32_0 = arith.constant 0 : i32
    %c0_i32_1 = arith.constant 0 : i32
    %c0_i32_2 = arith.constant 0 : i32
    %c0_i32_3 = arith.constant 0 : i32
    return %c0_i32, %c0_i32_0, %c0_i32_1, %c0_i32_2 : i32, i32, i32, i32
  }
  func.func @transform_2(%arg0: i32) -> (i32, i32) {
    %c0_i32 = arith.constant 0 : i32
    %c0_i32_0 = arith.constant 0 : i32
    %c0_i32_1 = arith.constant 0 : i32
    return %c0_i32, %c0_i32_0 : i32, i32
  }
  func.func @transform_3(%arg0: i32) -> (i32, i32, i32, i32) {
    %c0_i32 = arith.constant 0 : i32
    %c0_i32_0 = arith.constant 0 : i32
    %c0_i32_1 = arith.constant 0 : i32
    %c0_i32_2 = arith.constant 0 : i32
    return %arg0, %c0_i32, %c0_i32_0, %c0_i32_1 : i32, i32, i32, i32
  }
}

</mosaic_0001>

<llo_original>
// kernel: tpu_custom_call.1
$region0: #{tpu_custom_call.1}
  #allocation0 [shape = 'u32[]', space=smem, size = 0x4, offset = 0x4, fixed_abs, tag = 'smem constant byte address 0x4 - core index']
  #allocation1 [shape = 'u32[144,128]{1,0:T(1,128)}', space=vmem, size = 0x12000, scoped, tag = 'internal scratch']
  %s0 = inlined_call_operand.vmem [shape: f32[2,18,18,128], index: 0, kind: input, shape index: {}]
  %s1 = inlined_call_operand.vmem [shape: bf16[3,3,128,128], index: 1, kind: input, shape index: {}]
  %s2 = inlined_call_operand.vmem [shape: f32[1,128], index: 2, kind: input, shape index: {}]
  %s3 = inlined_call_operand.hbm [shape: f32[2,16,16,128], index: 3, kind: output, shape index: {}]
  %s4 = sld [smem:[#allocation0]]
  $region45: #{tpu_custom_call.1} parent=0
    _
  %s6 = ssub.s32 1, %s4
  %s7 = scalar_select 0, %s6, %s4
  $region1: #{tpu_custom_call.1} parent=0
    #allocation2 [shape = 'u8[262144]{0}', space=vmem, size = 0x40000, scoped, tag = 'output window, operand 0']
    #allocation3 [shape = 's32[2]{0}', space=sflag, size = 0x8, scoped, tag = 'scoped memory for tpu_custom_call.1']
    %8 = vsyncpa [#allocation3], 0
    %s9 = scalar_lea.sflag [#allocation3], 1
    %10 = vsyncpa %s9, 0
    loop: start=0, step=1, limit=4
    $region2: #{tpu_custom_call.1} parent=1 // loop_pre_header
      _
    $region3: #{tpu_custom_call.1} parent=1 // loop_header
      %s12 = sphi 0, %s16
      %p13 = scmp.ge.s32.totalorder %s12, 4
      %s22 = sphi 0, %s24
      %s25 = sphi 0, %s22
      %s26 = sphi 0, %s25
      %s42 = sphi 0, %s26
      %s46 = sphi 0, %s46
      %s48 = sphi 0, %s46
      %s49 = sphi 0, %s48
      %s63 = sphi 0, %s49
      %s67 = sphi 0, %s67
      %s69 = sphi 0, %s67
      %s70 = sphi 0, %s69
      %s84 = sphi 0, %s70
      %s90 = sphi 0, %s92
      %s93 = sphi 0, %s90
      %s94 = sphi 0, %s93
      %s110 = sphi 0, %s94
    $region4: #{tpu_custom_call.1} parent=1 // loop_header_branch
      %15 = sbr.rel (%p13) target = $region8
    $region5: #{tpu_custom_call.1} parent=1 // loop_body
      %s17 = ssub.s32 %s12, 1
      %s18 = ssub.s32 %s12, 2
      %s19 = sadd.s32 %s12, 1
      %s20 = ssub.s32 %s12, %s19
      %p21 = scmp.eq.s32.totalorder %s20, 0
      %s23 = sadd.s32 %s22, 1
      %s24 = scalar_select %p21, %s22, %s23
      %p27 = pneg %p21
      %p28 = scmp.eq.s32.totalorder %s12, 1
      %p29 = por %p27, %p28
      %p30 = scmp.ne.s32.totalorder %s22, %s25
      %p31 = scmp.eq.s32.totalorder %s12, 0
      %p32 = por %p30, %p31
      %p33 = scmp.ne.s32.totalorder %s22, %s25
      %p34 = scmp.eq.s32.totalorder %s17, 1
      %p35 = por %p33, %p34
      %p36 = scmp.ne.s32.totalorder %s25, %s26
      %p37 = scmp.eq.s32.totalorder %s17, 0
      %p38 = por %p36, %p37
      %p39 = scmp.ne.s32.totalorder %s25, %s26
      %p40 = scmp.eq.s32.totalorder %s18, 1
      %p41 = por %p39, %p40
      %p43 = scmp.ne.s32.totalorder %s26, %s42
      %p44 = scmp.eq.s32.totalorder %s18, 0
      %p45 = por %p43, %p44
      %s47 = sadd.s32 %s46, 1
      %p50 = scmp.eq.s32.totalorder %s12, 1
      %p51 = scmp.ne.s32.totalorder %s46, %s48
      %p52 = scmp.eq.s32.totalorder %s12, 0
      %p53 = por %p51, %p52
      %p54 = scmp.ne.s32.totalorder %s46, %s48
      %p55 = scmp.eq.s32.totalorder %s17, 1
      %p56 = por %p54, %p55
      %p57 = scmp.ne.s32.totalorder %s48, %s49
      %p58 = scmp.eq.s32.totalorder %s17, 0
      %p59 = por %p57, %p58
      %p60 = scmp.ne.s32.totalorder %s48, %s49
      %p61 = scmp.eq.s32.totalorder %s18, 1
      %p62 = por %p60, %p61
      %p64 = scmp.ne.s32.totalorder %s49, %s63
      %p65 = scmp.eq.s32.totalorder %s18, 0
      %p66 = por %p64, %p65
      %s68 = sadd.s32 %s67, 1
      %p71 = scmp.eq.s32.totalorder %s12, 1
      %p72 = scmp.ne.s32.totalorder %s67, %s69
      %p73 = scmp.eq.s32.totalorder %s12, 0
      %p74 = por %p72, %p73
      %p75 = scmp.ne.s32.totalorder %s67, %s69
      %p76 = scmp.eq.s32.totalorder %s17, 1
      %p77 = por %p75, %p76
      %p78 = scmp.ne.s32.totalorder %s69, %s70
      %p79 = scmp.eq.s32.totalorder %s17, 0
      %p80 = por %p78, %p79
      %p81 = scmp.ne.s32.totalorder %s69, %s70
      %p82 = scmp.eq.s32.totalorder %s18, 1
      %p83 = por %p81, %p82
      %p85 = scmp.ne.s32.totalorder %s70, %s84
      %p86 = scmp.eq.s32.totalorder %s18, 0
      %p87 = por %p85, %p86
      %s88 = ssub.s32 %s12, %s19
      %p89 = scmp.eq.s32.totalorder %s88, 0
      %s91 = sadd.s32 %s90, 1
      %s92 = scalar_select %p89, %s90, %s91
      %p95 = pneg %p89
      %p96 = scmp.eq.s32.totalorder %s12, 1
      %p97 = por %p95, %p96
      %p98 = scmp.ne.s32.totalorder %s90, %s93
      %p99 = scmp.eq.s32.totalorder %s12, 0
      %p100 = por %p98, %p99
      %p101 = scmp.ne.s32.totalorder %s90, %s93
      %p102 = scmp.eq.s32.totalorder %s17, 1
      %p103 = por %p101, %p102
      %p104 = scmp.ne.s32.totalorder %s93, %s94
      %p105 = scmp.eq.s32.totalorder %s17, 0
      %p106 = por %p104, %p105
      %p107 = scmp.ne.s32.totalorder %s93, %s94
      %p108 = scmp.eq.s32.totalorder %s18, 1
      %p109 = por %p107, %p108
      %p111 = scmp.ne.s32.totalorder %s94, %s110
      %p112 = scmp.eq.s32.totalorder %s18, 0
      %p113 = por %p111, %p112
      %p114 = scmp.le.s32.totalorder 1, %s12
      %p115 = scmp.lt.s32.totalorder %s12, 3
      %p116 = pnand %p114, %p115
      %p117 = pneg %p116
      // Predicated region
      $region9: #{tpu_custom_call.1} parent=5 // pred_check
        _
      $region10: #{tpu_custom_call.1} parent=5 // pred_check_branch
        %119 = sbr.rel (%p116) target = $region12
      $region11: #{tpu_custom_call.1} parent=5 // pred_region
        %s120 = ssub.s32 %s12, 1
        // Predicated region
        $region13: #{tpu_custom_call.1} parent=11 // pred_check
          %p121 = pneg %p59
        $region14: #{tpu_custom_call.1} parent=11 // pred_check_branch
          %123 = sbr.rel (%p121) target = $region16
        $region15: #{tpu_custom_call.1} parent=11 // pred_region
          _
        $region16: #{tpu_custom_call.1} parent=11 // pred_fallthru
          _
        // Predicated region
        $region17: #{tpu_custom_call.1} parent=11 // pred_check
          %p124 = pneg %p80
        $region18: #{tpu_custom_call.1} parent=11 // pred_check_branch
          %126 = sbr.rel (%p124) target = $region20
        $region19: #{tpu_custom_call.1} parent=11 // pred_region
          _
        $region20: #{tpu_custom_call.1} parent=11 // pred_fallthru
          _
      $region12: #{tpu_custom_call.1} parent=5 // pred_fallthru
        _
      %p127 = scmp.lt.s32.totalorder %s12, 2
      // Predicated region
      $region21: #{tpu_custom_call.1} parent=5 // pred_check
        %p128 = pneg %p127
      $region22: #{tpu_custom_call.1} parent=5 // pred_check_branch
        %130 = sbr.rel (%p128) target = $region24
      $region23: #{tpu_custom_call.1} parent=5 // pred_region
        // Predicated region
        $region25: #{tpu_custom_call.1} parent=23 // pred_check
          %p131 = pneg %p32
        $region26: #{tpu_custom_call.1} parent=23 // pred_check_branch
          %133 = sbr.rel (%p131) target = $region28
        $region27: #{tpu_custom_call.1} parent=23 // pred_region
          %p134 = scmp.lt.s32.totalorder %s12, 1
          %s135 = scalar_select %p134, %s12, 1
          %s136 = smul.addr %s135, 54
          %s137 = smul.addr %s136, 8
          %s138 = scalar_lea.vmem %s0, %s137
        $region28: #{tpu_custom_call.1} parent=23 // pred_fallthru
          _
      $region24: #{tpu_custom_call.1} parent=5 // pred_fallthru
        _
      %p139 = scmp.le.s32.totalorder 1, %s12
      %p140 = scmp.lt.s32.totalorder %s12, 3
      %p141 = pnand %p139, %p140
      %p142 = pneg %p141
      // Predicated region
      $region29: #{tpu_custom_call.1} parent=5 // pred_check
        _
      $region30: #{tpu_custom_call.1} parent=5 // pred_check_branch
        %144 = sbr.rel (%p141) target = $region32
      $region31: #{tpu_custom_call.1} parent=5 // pred_region
        %s145 = ssub.s32 %s12, 1
        %p146 = scmp.lt.s32.totalorder %s17, 1
        %s147 = scalar_select %p146, %s17, 1
        %s148 = smul.addr %s147, 54
        %s149 = smul.addr %s148, 8
        %s150 = scalar_lea.vmem %s0, %s149
        %p151 = pneg %p38
        %p152 = pneg %p35
        %p153 = pneg %p59
        %p154 = pneg %p56
        %p155 = pneg %p80
        %p156 = pneg %p77
        %p157 = pneg %p106
        %p158 = pneg %p103
        %s159 = sand.u32 %s93, 1
        %s160 = scalar_lea.sflag [#allocation3], %s159
        %s161 = sand.u32 %s93, 1
        %s162 = smul.addr %s161, 256
        %s163 = scalar_lea.vmem [#allocation2], %s162
        %p164 = scmp.lt.s32.totalorder %s17, 1
        %s165 = scalar_select %p164, %s17, 1
        %s166 = smul.addr %s165, 54
        %s167 = smul.addr %s166, 8
        %s168 = scalar_lea.vmem %s0, %s167
        %v170 = vld [vmem:[%s168] sm:$0xff]
        %v171 = vld [vmem:[%s168 + $0x8] sm:$0xff]
        %v172 = vld [vmem:[%s168 + $0x10] sm:$0x3]
        %v173 = vld [vmem:[%s168 + $0x18] sm:$0xff]
        %v174 = vld [vmem:[%s168 + $0x20] sm:$0xff]
        %v175 = vld [vmem:[%s168 + $0x28] sm:$0x3]
        %v176 = vld [vmem:[%s168 + $0x30] sm:$0xff]
        %v177 = vld [vmem:[%s168 + $0x38] sm:$0xff]
        %v178 = vld [vmem:[%s168 + $0x40] sm:$0x3]
        %v179 = vld [vmem:[%s168 + $0x48] sm:$0xff]
        %v180 = vld [vmem:[%s168 + $0x50] sm:$0xff]
        %v181 = vld [vmem:[%s168 + $0x58] sm:$0x3]
        %v182 = vld [vmem:[%s168 + $0x60] sm:$0xff]
        %v183 = vld [vmem:[%s168 + $0x68] sm:$0xff]
        %v184 = vld [vmem:[%s168 + $0x70] sm:$0x3]
        %v185 = vld [vmem:[%s168 + $0x78] sm:$0xff]
        %v186 = vld [vmem:[%s168 + $0x80] sm:$0xff]
        %v187 = vld [vmem:[%s168 + $0x88] sm:$0x3]
        %v188 = vld [vmem:[%s168 + $0x90] sm:$0xff]
        %v189 = vld [vmem:[%s168 + $0x98] sm:$0xff]
        %v190 = vld [vmem:[%s168 + $0xa0] sm:$0x3]
        %v191 = vld [vmem:[%s168 + $0xa8] sm:$0xff]
        %v192 = vld [vmem:[%s168 + $0xb0] sm:$0xff]
        %v193 = vld [vmem:[%s168 + $0xb8] sm:$0x3]
        %v194 = vld [vmem:[%s168 + $0xc0] sm:$0xff]
        %v195 = vld [vmem:[%s168 + $0xc8] sm:$0xff]
        %v196 = vld [vmem:[%s168 + $0xd0] sm:$0x3]
        %v197 = vld [vmem:[%s168 + $0xd8] sm:$0xff]
        %v198 = vld [vmem:[%s168 + $0xe0] sm:$0xff]
        %v199 = vld [vmem:[%s168 + $0xe8] sm:$0x3]
        %v200 = vld [vmem:[%s168 + $0xf0] sm:$0xff]
        %v201 = vld [vmem:[%s168 + $0xf8] sm:$0xff]
        %v202 = vld [vmem:[%s168 + $0x100] sm:$0x3]
        %v203 = vld [vmem:[%s168 + $0x108] sm:$0xff]
        %v204 = vld [vmem:[%s168 + $0x110] sm:$0xff]
        %v205 = vld [vmem:[%s168 + $0x118] sm:$0x3]
        %v206 = vld [vmem:[%s168 + $0x120] sm:$0xff]
        %v207 = vld [vmem:[%s168 + $0x128] sm:$0xff]
        %v208 = vld [vmem:[%s168 + $0x130] sm:$0x3]
        %v209 = vld [vmem:[%s168 + $0x138] sm:$0xff]
        %v210 = vld [vmem:[%s168 + $0x140] sm:$0xff]
        %v211 = vld [vmem:[%s168 + $0x148] sm:$0x3]
        %v212 = vld [vmem:[%s168 + $0x150] sm:$0xff]
        %v213 = vld [vmem:[%s168 + $0x158] sm:$0xff]
        %v214 = vld [vmem:[%s168 + $0x160] sm:$0x3]
        %v215 = vld [vmem:[%s168 + $0x168] sm:$0xff]
        %v216 = vld [vmem:[%s168 + $0x170] sm:$0xff]
        %v217 = vld [vmem:[%s168 + $0x178] sm:$0x3]
        %v218 = vld [vmem:[%s168 + $0x180] sm:$0xff]
        %v219 = vld [vmem:[%s168 + $0x188] sm:$0xff]
        %v220 = vld [vmem:[%s168 + $0x190] sm:$0x3]
        %v221 = vld [vmem:[%s168 + $0x198] sm:$0xff]
        %v222 = vld [vmem:[%s168 + $0x1a0] sm:$0xff]
        %v223 = vld [vmem:[%s168 + $0x1a8] sm:$0x3]
        %v224 = vld [vmem:[%s1] sm:$0xf]
        %v225 = vld [vmem:[%s1 + $0x4] sm:$0xf]
        %v226 = vld [vmem:[%s1 + $0x8] sm:$0xf]
        %v227 = vld [vmem:[%s1 + $0xc] sm:$0xf]
        %v228 = vld [vmem:[%s1 + $0x10] sm:$0xf]
        %v229 = vld [vmem:[%s1 + $0x14] sm:$0xf]
        %v230 = vld [vmem:[%s1 + $0x18] sm:$0xf]
        %v231 = vld [vmem:[%s1 + $0x1c] sm:$0xf]
        %v232 = vld [vmem:[%s1 + $0x20] sm:$0xf]
        %v233 = vld [vmem:[%s1 + $0x24] sm:$0xf]
        %v234 = vld [vmem:[%s1 + $0x28] sm:$0xf]
        %v235 = vld [vmem:[%s1 + $0x2c] sm:$0xf]
        %v236 = vld [vmem:[%s1 + $0x30] sm:$0xf]
        %v237 = vld [vmem:[%s1 + $0x34] sm:$0xf]
        %v238 = vld [vmem:[%s1 + $0x38] sm:$0xf]
        %v239 = vld [vmem:[%s1 + $0x3c] sm:$0xf]
        %v240 = vld [vmem:[%s1 + $0x40] sm:$0xf]
        %v241 = vld [vmem:[%s1 + $0x44] sm:$0xf]
        %v242 = vld [vmem:[%s1 + $0x48] sm:$0xf]
        %v243 = vld [vmem:[%s1 + $0x4c] sm:$0xf]
        %v244 = vld [vmem:[%s1 + $0x50] sm:$0xf]
        %v245 = vld [vmem:[%s1 + $0x54] sm:$0xf]
        %v246 = vld [vmem:[%s1 + $0x58] sm:$0xf]
        %v247 = vld [vmem:[%s1 + $0x5c] sm:$0xf]
        %v248 = vld [vmem:[%s1 + $0x60] sm:$0xf]
        %v249 = vld [vmem:[%s1 + $0x64] sm:$0xf]
        %v250 = vld [vmem:[%s1 + $0x68] sm:$0xf]
        %v251 = vld [vmem:[%s1 + $0x6c] sm:$0xf]
        %v252 = vld [vmem:[%s1 + $0x70] sm:$0xf]
        %v253 = vld [vmem:[%s1 + $0x74] sm:$0xf]
        %v254 = vld [vmem:[%s1 + $0x78] sm:$0xf]
        %v255 = vld [vmem:[%s1 + $0x7c] sm:$0xf]
        %v256 = vld [vmem:[%s1 + $0x80] sm:$0xf]
        %v257 = vld [vmem:[%s1 + $0x84] sm:$0xf]
        %v258 = vld [vmem:[%s1 + $0x88] sm:$0xf]
        %v259 = vld [vmem:[%s1 + $0x8c] sm:$0xf]
        %v260 = vld [vmem:[%s1 + $0x90] sm:$0xf]
        %v261 = vld [vmem:[%s1 + $0x94] sm:$0xf]
        %v262 = vld [vmem:[%s1 + $0x98] sm:$0xf]
        %v263 = vld [vmem:[%s1 + $0x9c] sm:$0xf]
        %v264 = vld [vmem:[%s1 + $0xa0] sm:$0xf]
        %v265 = vld [vmem:[%s1 + $0xa4] sm:$0xf]
        %v266 = vld [vmem:[%s1 + $0xa8] sm:$0xf]
        %v267 = vld [vmem:[%s1 + $0xac] sm:$0xf]
        %v268 = vld [vmem:[%s1 + $0xb0] sm:$0xf]
        %v269 = vld [vmem:[%s1 + $0xb4] sm:$0xf]
        %v270 = vld [vmem:[%s1 + $0xb8] sm:$0xf]
        %v271 = vld [vmem:[%s1 + $0xbc] sm:$0xf]
        %v272 = vld [vmem:[%s1 + $0xc0] sm:$0xf]
        %v273 = vld [vmem:[%s1 + $0xc4] sm:$0xf]
        %v274 = vld [vmem:[%s1 + $0xc8] sm:$0xf]
        %v275 = vld [vmem:[%s1 + $0xcc] sm:$0xf]
        %v276 = vld [vmem:[%s1 + $0xd0] sm:$0xf]
        %v277 = vld [vmem:[%s1 + $0xd4] sm:$0xf]
        %v278 = vld [vmem:[%s1 + $0xd8] sm:$0xf]
        %v279 = vld [vmem:[%s1 + $0xdc] sm:$0xf]
        %v280 = vld [vmem:[%s1 + $0xe0] sm:$0xf]
        %v281 = vld [vmem:[%s1 + $0xe4] sm:$0xf]
        %v282 = vld [vmem:[%s1 + $0xe8] sm:$0xf]
        %v283 = vld [vmem:[%s1 + $0xec] sm:$0xf]
        %v284 = vld [vmem:[%s1 + $0xf0] sm:$0xf]
        %v285 = vld [vmem:[%s1 + $0xf4] sm:$0xf]
        %v286 = vld [vmem:[%s1 + $0xf8] sm:$0xf]
        %v287 = vld [vmem:[%s1 + $0xfc] sm:$0xf]
        %v288 = vld [vmem:[%s1 + $0x100] sm:$0xf]
        %v289 = vld [vmem:[%s1 + $0x104] sm:$0xf]
        %v290 = vld [vmem:[%s1 + $0x108] sm:$0xf]
        %v291 = vld [vmem:[%s1 + $0x10c] sm:$0xf]
        %v292 = vld [vmem:[%s1 + $0x110] sm:$0xf]
        %v293 = vld [vmem:[%s1 + $0x114] sm:$0xf]
        %v294 = vld [vmem:[%s1 + $0x118] sm:$0xf]
        %v295 = vld [vmem:[%s1 + $0x11c] sm:$0xf]
        %v296 = vld [vmem:[%s1 + $0x120] sm:$0xf]
        %v297 = vld [vmem:[%s1 + $0x124] sm:$0xf]
        %v298 = vld [vmem:[%s1 + $0x128] sm:$0xf]
        %v299 = vld [vmem:[%s1 + $0x12c] sm:$0xf]
        %v300 = vld [vmem:[%s1 + $0x130] sm:$0xf]
        %v301 = vld [vmem:[%s1 + $0x134] sm:$0xf]
        %v302 = vld [vmem:[%s1 + $0x138] sm:$0xf]
        %v303 = vld [vmem:[%s1 + $0x13c] sm:$0xf]
        %v304 = vld [vmem:[%s1 + $0x140] sm:$0xf]
        %v305 = vld [vmem:[%s1 + $0x144] sm:$0xf]
        %v306 = vld [vmem:[%s1 + $0x148] sm:$0xf]
        %v307 = vld [vmem:[%s1 + $0x14c] sm:$0xf]
        %v308 = vld [vmem:[%s1 + $0x150] sm:$0xf]
        %v309 = vld [vmem:[%s1 + $0x154] sm:$0xf]
        %v310 = vld [vmem:[%s1 + $0x158] sm:$0xf]
        %v311 = vld [vmem:[%s1 + $0x15c] sm:$0xf]
        %v312 = vld [vmem:[%s1 + $0x160] sm:$0xf]
        %v313 = vld [vmem:[%s1 + $0x164] sm:$0xf]
        %v314 = vld [vmem:[%s1 + $0x168] sm:$0xf]
        %v315 = vld [vmem:[%s1 + $0x16c] sm:$0xf]
        %v316 = vld [vmem:[%s1 + $0x170] sm:$0xf]
        %v317 = vld [vmem:[%s1 + $0x174] sm:$0xf]
        %v318 = vld [vmem:[%s1 + $0x178] sm:$0xf]
        %v319 = vld [vmem:[%s1 + $0x17c] sm:$0xf]
        %v320 = vld [vmem:[%s1 + $0x180] sm:$0xf]
        %v321 = vld [vmem:[%s1 + $0x184] sm:$0xf]
        %v322 = vld [vmem:[%s1 + $0x188] sm:$0xf]
        %v323 = vld [vmem:[%s1 + $0x18c] sm:$0xf]
        %v324 = vld [vmem:[%s1 + $0x190] sm:$0xf]
        %v325 = vld [vmem:[%s1 + $0x194] sm:$0xf]
        %v326 = vld [vmem:[%s1 + $0x198] sm:$0xf]
        %v327 = vld [vmem:[%s1 + $0x19c] sm:$0xf]
        %v328 = vld [vmem:[%s1 + $0x1a0] sm:$0xf]
        %v329 = vld [vmem:[%s1 + $0x1a4] sm:$0xf]
        %v330 = vld [vmem:[%s1 + $0x1a8] sm:$0xf]
        %v331 = vld [vmem:[%s1 + $0x1ac] sm:$0xf]
        %v332 = vld [vmem:[%s1 + $0x1b0] sm:$0xf]
        %v333 = vld [vmem:[%s1 + $0x1b4] sm:$0xf]
        %v334 = vld [vmem:[%s1 + $0x1b8] sm:$0xf]
        %v335 = vld [vmem:[%s1 + $0x1bc] sm:$0xf]
        %v336 = vld [vmem:[%s1 + $0x1c0] sm:$0xf]
        %v337 = vld [vmem:[%s1 + $0x1c4] sm:$0xf]
        %v338 = vld [vmem:[%s1 + $0x1c8] sm:$0xf]
        %v339 = vld [vmem:[%s1 + $0x1cc] sm:$0xf]
        %v340 = vld [vmem:[%s1 + $0x1d0] sm:$0xf]
        %v341 = vld [vmem:[%s1 + $0x1d4] sm:$0xf]
        %v342 = vld [vmem:[%s1 + $0x1d8] sm:$0xf]
        %v343 = vld [vmem:[%s1 + $0x1dc] sm:$0xf]
        %v344 = vld [vmem:[%s1 + $0x1e0] sm:$0xf]
        %v345 = vld [vmem:[%s1 + $0x1e4] sm:$0xf]
        %v346 = vld [vmem:[%s1 + $0x1e8] sm:$0xf]
        %v347 = vld [vmem:[%s1 + $0x1ec] sm:$0xf]
        %v348 = vld [vmem:[%s1 + $0x1f0] sm:$0xf]
        %v349 = vld [vmem:[%s1 + $0x1f4] sm:$0xf]
        %v350 = vld [vmem:[%s1 + $0x1f8] sm:$0xf]
        %v351 = vld [vmem:[%s1 + $0x1fc] sm:$0xf]
        %v352 = vld [vmem:[%s1 + $0x200] sm:$0xf]
        %v353 = vld [vmem:[%s1 + $0x204] sm:$0xf]
        %v354 = vld [vmem:[%s1 + $0x208] sm:$0xf]
        %v355 = vld [vmem:[%s1 + $0x20c] sm:$0xf]
        %v356 = vld [vmem:[%s1 + $0x210] sm:$0xf]
        %v357 = vld [vmem:[%s1 + $0x214] sm:$0xf]
        %v358 = vld [vmem:[%s1 + $0x218] sm:$0xf]
        %v359 = vld [vmem:[%s1 + $0x21c] sm:$0xf]
        %v360 = vld [vmem:[%s1 + $0x220] sm:$0xf]
        %v361 = vld [vmem:[%s1 + $0x224] sm:$0xf]
        %v362 = vld [vmem:[%s1 + $0x228] sm:$0xf]
        %v363 = vld [vmem:[%s1 + $0x22c] sm:$0xf]
        %v364 = vld [vmem:[%s1 + $0x230] sm:$0xf]
        %v365 = vld [vmem:[%s1 + $0x234] sm:$0xf]
        %v366 = vld [vmem:[%s1 + $0x238] sm:$0xf]
        %v367 = vld [vmem:[%s1 + $0x23c] sm:$0xf]
        %v368 = vld [vmem:[%s2] sm:$0x1]
        %v369 = vpack.c.bf16 %v171, %v170
        %v370 = vpack.c.bf16 %v174, %v173
        %v371 = vpack.c.bf16 %v177, %v176
        %v372 = vpack.c.bf16 %v180, %v179
        %v373 = vpack.c.bf16 %v183, %v182
        %v374 = vpack.c.bf16 %v186, %v185
        %v375 = vpack.c.bf16 %v189, %v188
        %v376 = vpack.c.bf16 %v192, %v191
        %v377 = vpack.c.bf16 %v195, %v194
        %v378 = vpack.c.bf16 %v198, %v197
        %v379 = vpack.c.bf16 %v201, %v200
        %v380 = vpack.c.bf16 %v204, %v203
        %v381 = vpack.c.bf16 %v207, %v206
        %v382 = vpack.c.bf16 %v210, %v209
        %v383 = vpack.c.bf16 %v213, %v212
        %v384 = vpack.c.bf16 %v216, %v215
        %vm433 = vcmask 1046528
        %v434 = vrot.slane %v170, 1
        %v435 = vrot.slane %v171, 1
        %v436 = vsel %vm433, %v434, %v435
        %v437 = vrot.slane %v172, 1
        %v438 = vsel %vm433, %v435, %v437
        %v439 = vrot.slane %v173, 1
        %v440 = vrot.slane %v174, 1
        %v441 = vsel %vm433, %v439, %v440
        %v442 = vrot.slane %v175, 1
        %v443 = vsel %vm433, %v440, %v442
        %v444 = vrot.slane %v176, 1
        %v445 = vrot.slane %v177, 1
        %v446 = vsel %vm433, %v444, %v445
        %v447 = vrot.slane %v178, 1
        %v448 = vsel %vm433, %v445, %v447
        %v449 = vrot.slane %v179, 1
        %v450 = vrot.slane %v180, 1
        %v451 = vsel %vm433, %v449, %v450
        %v452 = vrot.slane %v181, 1
        %v453 = vsel %vm433, %v450, %v452
        %v454 = vrot.slane %v182, 1
        %v455 = vrot.slane %v183, 1
        %v456 = vsel %vm433, %v454, %v455
        %v457 = vrot.slane %v184, 1
        %v458 = vsel %vm433, %v455, %v457
        %v459 = vrot.slane %v185, 1
        %v460 = vrot.slane %v186, 1
        %v461 = vsel %vm433, %v459, %v460
        %v462 = vrot.slane %v187, 1
        %v463 = vsel %vm433, %v460, %v462
        %v464 = vrot.slane %v188, 1
        %v465 = vrot.slane %v189, 1
        %v466 = vsel %vm433, %v464, %v465
        %v467 = vrot.slane %v190, 1
        %v468 = vsel %vm433, %v465, %v467
        %v469 = vrot.slane %v191, 1
        %v470 = vrot.slane %v192, 1
        %v471 = vsel %vm433, %v469, %v470
        %v472 = vrot.slane %v193, 1
        %v473 = vsel %vm433, %v470, %v472
        %v474 = vrot.slane %v194, 1
        %v475 = vrot.slane %v195, 1
        %v476 = vsel %vm433, %v474, %v475
        %v477 = vrot.slane %v196, 1
        %v478 = vsel %vm433, %v475, %v477
        %v479 = vrot.slane %v197, 1
        %v480 = vrot.slane %v198, 1
        %v481 = vsel %vm433, %v479, %v480
        %v482 = vrot.slane %v199, 1
        %v483 = vsel %vm433, %v480, %v482
        %v484 = vrot.slane %v200, 1
        %v485 = vrot.slane %v201, 1
        %v486 = vsel %vm433, %v484, %v485
        %v487 = vrot.slane %v202, 1
        %v488 = vsel %vm433, %v485, %v487
        %v489 = vrot.slane %v203, 1
        %v490 = vrot.slane %v204, 1
        %v491 = vsel %vm433, %v489, %v490
        %v492 = vrot.slane %v205, 1
        %v493 = vsel %vm433, %v490, %v492
        %v494 = vrot.slane %v206, 1
        %v495 = vrot.slane %v207, 1
        %v496 = vsel %vm433, %v494, %v495
        %v497 = vrot.slane %v208, 1
        %v498 = vsel %vm433, %v495, %v497
        %v499 = vrot.slane %v209, 1
        %v500 = vrot.slane %v210, 1
        %v501 = vsel %vm433, %v499, %v500
        %v502 = vrot.slane %v211, 1
        %v503 = vsel %vm433, %v500, %v502
        %v504 = vrot.slane %v212, 1
        %v505 = vrot.slane %v213, 1
        %v506 = vsel %vm433, %v504, %v505
        %v507 = vrot.slane %v214, 1
        %v508 = vsel %vm433, %v505, %v507
        %v509 = vrot.slane %v215, 1
        %v510 = vrot.slane %v216, 1
        %v511 = vsel %vm433, %v509, %v510
        %v512 = vrot.slane %v217, 1
        %v513 = vsel %vm433, %v510, %v512
        %v546 = vpack.c.bf16 %v438, %v436
        %v547 = vpack.c.bf16 %v443, %v441
        %v548 = vpack.c.bf16 %v448, %v446
        %v549 = vpack.c.bf16 %v453, %v451
        %v550 = vpack.c.bf16 %v458, %v456
        %v551 = vpack.c.bf16 %v463, %v461
        %v552 = vpack.c.bf16 %v468, %v466
        %v553 = vpack.c.bf16 %v473, %v471
        %v554 = vpack.c.bf16 %v478, %v476
        %v555 = vpack.c.bf16 %v483, %v481
        %v556 = vpack.c.bf16 %v488, %v486
        %v557 = vpack.c.bf16 %v493, %v491
        %v558 = vpack.c.bf16 %v498, %v496
        %v559 = vpack.c.bf16 %v503, %v501
        %v560 = vpack.c.bf16 %v508, %v506
        %v561 = vpack.c.bf16 %v513, %v511
        %v578 = vunpack.c.l.b16 %v240
        %v579 = vunpack.c.l.b16 %v241
        %v580 = vunpack.c.l.b16 %v242
        %v581 = vunpack.c.l.b16 %v243
        %v582 = vunpack.c.l.b16 %v244
        %v583 = vunpack.c.l.b16 %v245
        %v584 = vunpack.c.l.b16 %v246
        %v585 = vunpack.c.l.b16 %v247
        %v586 = vunpack.c.l.b16 %v248
        %v587 = vunpack.c.l.b16 %v249
        %v588 = vunpack.c.l.b16 %v250
        %v589 = vunpack.c.l.b16 %v251
        %v590 = vunpack.c.l.b16 %v252
        %v591 = vunpack.c.l.b16 %v253
        %v592 = vunpack.c.l.b16 %v254
        %v593 = vunpack.c.l.b16 %v255
        %v594 = vpack.c.b16 %v579, %v578
        %v595 = vpack.c.b16 %v581, %v580
        %v596 = vpack.c.b16 %v583, %v582
        %v597 = vpack.c.b16 %v585, %v584
        %v598 = vpack.c.b16 %v587, %v586
        %v599 = vpack.c.b16 %v589, %v588
        %v600 = vpack.c.b16 %v591, %v590
        %v601 = vpack.c.b16 %v593, %v592
        %610 = vmatprep.subr.bf16.mxu0 0
        %611 = vmatpush1.bf16.msra.mxu0 %v594
        %612 = vmatprep.subr.bf16.mxu0 0
        %613 = vmatpush1.bf16.msra.mxu0 %v595
        %614 = vmatprep.subr.bf16.mxu0 0
        %615 = vmatpush1.bf16.msra.mxu0 %v596
        %616 = vmatprep.subr.bf16.mxu0 0
        %617 = vmatpush1.bf16.msra.mxu0 %v597
        %618 = vmatprep.subr.bf16.mxu0 0
        %619 = vmatpush1.bf16.msra.mxu0 %v598
        %620 = vmatprep.subr.bf16.mxu0 0
        %621 = vmatpush1.bf16.msra.mxu0 %v599
        %622 = vmatprep.subr.bf16.mxu0 0
        %623 = vmatpush1.bf16.msra.mxu0 %v600
        %624 = vmatprep.subr.bf16.mxu0 0
        %625 = vmatpush1.bf16.msra.mxu0 %v601
        %626 = vmatprep.subr.bf16.mxu0 0
        %627 = vmatpush1.bf16.msra.mxu0 0
        %628 = vmatprep.subr.bf16.mxu0 0
        %629 = vmatpush1.bf16.msra.mxu0 0
        %630 = vmatprep.subr.bf16.mxu0 0
        %631 = vmatpush1.bf16.msra.mxu0 0
        %632 = vmatprep.subr.bf16.mxu0 0
        %633 = vmatpush1.bf16.msra.mxu0 0
        %634 = vmatprep.subr.bf16.mxu0 0
        %635 = vmatpush1.bf16.msra.mxu0 0
        %636 = vmatprep.subr.bf16.mxu0 0
        %637 = vmatpush1.bf16.msra.mxu0 0
        %638 = vmatprep.subr.bf16.mxu0 0
        %639 = vmatpush1.bf16.msra.mxu0 0
        %640 = vmatprep.subr.bf16.mxu0 0
        %641 = vmatpush1.bf16.msra.mxu0 0
        %642 = vmatprep.mubr.bf16.mxu0 0
        %643 = vmatmul.mubr.bf16.gmra.mrb[0].mxu0 %v546
        %v644 = vpop.f32.mrb[0].mxu0
        %v645 = vadd.f32 0.0, %v644
        %v646 = vpop.f32.mrb[0].mxu0
        %v647 = vpop.f32.mrb[0].mxu0
        %v648 = vadd.f32 0.0, %v647
        %v649 = vpop.f32.mrb[0].mxu0
        %650 = vmatprep.mubr.bf16.mxu0 0
        %651 = vmatmul.mubr.bf16.gmra.mrb[0].mxu0 %v547
        %v652 = vpop.f32.mrb[0].mxu0
        %v653 = vadd.f32 0.0, %v652
        %v654 = vpop.f32.mrb[0].mxu0
        %v655 = vpop.f32.mrb[0].mxu0
        %v656 = vadd.f32 0.0, %v655
        %v657 = vpop.f32.mrb[0].mxu0
        %658 = vmatprep.mubr.bf16.mxu0 0
        %659 = vmatmul.mubr.bf16.gmra.mrb[0].mxu0 %v548
        %v660 = vpop.f32.mrb[0].mxu0
        %v661 = vadd.f32 0.0, %v660
        %v662 = vpop.f32.mrb[0].mxu0
        %v663 = vpop.f32.mrb[0].mxu0
        %v664 = vadd.f32 0.0, %v663
        %v665 = vpop.f32.mrb[0].mxu0
        %666 = vmatprep.mubr.bf16.mxu0 0
        %667 = vmatmul.mubr.bf16.gmra.mrb[0].mxu0 %v549
        %v668 = vpop.f32.mrb[0].mxu0
        %v669 = vadd.f32 0.0, %v668
        %v670 = vpop.f32.mrb[0].mxu0
        %v671 = vpop.f32.mrb[0].mxu0
        %v672 = vadd.f32 0.0, %v671
        %v673 = vpop.f32.mrb[0].mxu0
        %674 = vmatprep.mubr.bf16.mxu0 0
        %675 = vmatmul.mubr.bf16.gmra.mrb[0].mxu0 %v550
        %v676 = vpop.f32.mrb[0].mxu0
        %v677 = vadd.f32 0.0, %v676
        %v678 = vpop.f32.mrb[0].mxu0
        %v679 = vpop.f32.mrb[0].mxu0
        %v680 = vadd.f32 0.0, %v679
        %v681 = vpop.f32.mrb[0].mxu0
        %682 = vmatprep.mubr.bf16.mxu0 0
        %683 = vmatmul.mubr.bf16.gmra.mrb[0].mxu0 %v551
        %v684 = vpop.f32.mrb[0].mxu0
        %v685 = vadd.f32 0.0, %v684
        %v686 = vpop.f32.mrb[0].mxu0
        %v687 = vpop.f32.mrb[0].mxu0
        %v688 = vadd.f32 0.0, %v687
        %v689 = vpop.f32.mrb[0].mxu0
        %690 = vmatprep.mubr.bf16.mxu0 0
        %691 = vmatmul.mubr.bf16.gmra.mrb[0].mxu0 %v552
        %v692 = vpop.f32.mrb[0].mxu0
        %v693 = vadd.f32 0.0, %v692
        %v694 = vpop.f32.mrb[0].mxu0
        %v695 = vpop.f32.mrb[0].mxu0
        %v696 = vadd.f32 0.0, %v695
        %v697 = vpop.f32.mrb[0].mxu0
        %698 = vmatprep.mubr.bf16.mxu0 0
        %699 = vmatmul.mubr.bf16.gmra.mrb[0].mxu0 %v553
        %v700 = vpop.f32.mrb[0].mxu0
        %v701 = vadd.f32 0.0, %v700
        %v702 = vpop.f32.mrb[0].mxu0
        %v703 = vpop.f32.mrb[0].mxu0
        %v704 = vadd.f32 0.0, %v703
        %v705 = vpop.f32.mrb[0].mxu0
        %706 = vmatprep.mubr.bf16.mxu0 0
        %707 = vmatmul.mubr.bf16.gmra.mrb[0].mxu0 %v554
        %v708 = vpop.f32.mrb[0].mxu0
        %v709 = vadd.f32 0.0, %v708
        %v710 = vpop.f32.mrb[0].mxu0
        %v711 = vpop.f32.mrb[0].mxu0
        %v712 = vadd.f32 0.0, %v711
        %v713 = vpop.f32.mrb[0].mxu0
        %714 = vmatprep.mubr.bf16.mxu0 0
        %715 = vmatmul.mubr.bf16.gmra.mrb[0].mxu0 %v555
        %v716 = vpop.f32.mrb[0].mxu0
        %v717 = vadd.f32 0.0, %v716
        %v718 = vpop.f32.mrb[0].mxu0
        %v719 = vpop.f32.mrb[0].mxu0
        %v720 = vadd.f32 0.0, %v719
        %v721 = vpop.f32.mrb[0].mxu0
        %722 = vmatprep.mubr.bf16.mxu0 0
        %723 = vmatmul.mubr.bf16.gmra.mrb[0].mxu0 %v556
        %v724 = vpop.f32.mrb[0].mxu0
        %v725 = vadd.f32 0.0, %v724
        %v726 = vpop.f32.mrb[0].mxu0
        %v727 = vpop.f32.mrb[0].mxu0
        %v728 = vadd.f32 0.0, %v727
        %v729 = vpop.f32.mrb[0].mxu0
        %730 = vmatprep.mubr.bf16.mxu0 0
        %731 = vmatmul.mubr.bf16.gmra.mrb[0].mxu0 %v557
        %v732 = vpop.f32.mrb[0].mxu0
        %v733 = vadd.f32 0.0, %v732
        %v734 = vpop.f32.mrb[0].mxu0
        %v735 = vpop.f32.mrb[0].mxu0
        %v736 = vadd.f32 0.0, %v735
        %v737 = vpop.f32.mrb[0].mxu0
        %738 = vmatprep.mubr.bf16.mxu0 0
        %739 = vmatmul.mubr.bf16.gmra.mrb[0].mxu0 %v558
        %v740 = vpop.f32.mrb[0].mxu0
        %v741 = vadd.f32 0.0, %v740
        %v742 = vpop.f32.mrb[0].mxu0
        %v743 = vpop.f32.mrb[0].mxu0
        %v744 = vadd.f32 0.0, %v743
        %v745 = vpop.f32.mrb[0].mxu0
        %746 = vmatprep.mubr.bf16.mxu0 0
        %747 = vmatmul.mubr.bf16.gmra.mrb[0].mxu0 %v559
        %v748 = vpop.f32.mrb[0].mxu0
        %v749 = vadd.f32 0.0, %v748
        %v750 = vpop.f32.mrb[0].mxu0
        %v751 = vpop.f32.mrb[0].mxu0
        %v752 = vadd.f32 0.0, %v751
        %v753 = vpop.f32.mrb[0].mxu0
        %754 = vmatprep.mubr.bf16.mxu0 0
        %755 = vmatmul.mubr.bf16.gmra.mrb[0].mxu0 %v560
        %v756 = vpop.f32.mrb[0].mxu0
        %v757 = vadd.f32 0.0, %v756
        %v758 = vpop.f32.mrb[0].mxu0
        %v759 = vpop.f32.mrb[0].mxu0
        %v760 = vadd.f32 0.0, %v759
        %v761 = vpop.f32.mrb[0].mxu0
        %762 = vmatprep.mubr.bf16.mxu0 0
        %763 = vmatmul.mubr.bf16.gmra.mrb[0].mxu0 %v561
        %v764 = vpop.f32.mrb[0].mxu0
        %v765 = vadd.f32 0.0, %v764
        %v766 = vpop.f32.mrb[0].mxu0
        %v767 = vpop.f32.mrb[0].mxu0
        %v768 = vadd.f32 0.0, %v767
        %v769 = vpop.f32.mrb[0].mxu0
        %770 = vdwg.mxu0
        %v787 = vunpack.c.l.b16 %v224
        %v788 = vunpack.c.l.b16 %v225
        %v789 = vunpack.c.l.b16 %v226
        %v790 = vunpack.c.l.b16 %v227
        %v791 = vunpack.c.l.b16 %v228
        %v792 = vunpack.c.l.b16 %v229
        %v793 = vunpack.c.l.b16 %v230
        %v794 = vunpack.c.l.b16 %v231
        %v795 = vunpack.c.l.b16 %v232
        %v796 = vunpack.c.l.b16 %v233
        %v797 = vunpack.c.l.b16 %v234
        %v798 = vunpack.c.l.b16 %v235
        %v799 = vunpack.c.l.b16 %v236
        %v800 = vunpack.c.l.b16 %v237
        %v801 = vunpack.c.l.b16 %v238
        %v802 = vunpack.c.l.b16 %v239
        %v803 = vpack.c.b16 %v788, %v787
        %v804 = vpack.c.b16 %v790, %v789
        %v805 = vpack.c.b16 %v792, %v791
        %v806 = vpack.c.b16 %v794, %v793
        %v807 = vpack.c.b16 %v796, %v795
        %v808 = vpack.c.b16 %v798, %v797
        %v809 = vpack.c.b16 %v800, %v799
        %v810 = vpack.c.b16 %v802, %v801
        %819 = vmatprep.subr.bf16.mxu0 0
        %820 = vmatpush1.bf16.msra.mxu0 %v803
        %821 = vmatprep.subr.bf16.mxu0 0
        %822 = vmatpush1.bf16.msra.mxu0 %v804
        %823 = vmatprep.subr.bf16.mxu0 0
        %824 = vmatpush1.bf16.msra.mxu0 %v805
        %825 = vmatprep.subr.bf16.mxu0 0
        %826 = vmatpush1.bf16.msra.mxu0 %v806
        %827 = vmatprep.subr.bf16.mxu0 0
        %828 = vmatpush1.bf16.msra.mxu0 %v807
        %829 = vmatprep.subr.bf16.mxu0 0
        %830 = vmatpush1.bf16.msra.mxu0 %v808
        %831 = vmatprep.subr.bf16.mxu0 0
        %832 = vmatpush1.bf16.msra.mxu0 %v809
        %833 = vmatprep.subr.bf16.mxu0 0
        %834 = vmatpush1.bf16.msra.mxu0 %v810
        %835 = vmatprep.subr.bf16.mxu0 0
        %836 = vmatpush1.bf16.msra.mxu0 0
        %837 = vmatprep.subr.bf16.mxu0 0
        %838 = vmatpush1.bf16.msra.mxu0 0
        %839 = vmatprep.subr.bf16.mxu0 0
        %840 = vmatpush1.bf16.msra.mxu0 0
        %841 = vmatprep.subr.bf16.mxu0 0
        %842 = vmatpush1.bf16.msra.mxu0 0
        %843 = vmatprep.subr.bf16.mxu0 0
        %844 = vmatpush1.bf16.msra.mxu0 0
        %845 = vmatprep.subr.bf16.mxu0 0
        %846 = vmatpush1.bf16.msra.mxu0 0
        %847 = vmatprep.subr.bf16.mxu0 0
        %848 = vmatpush1.bf16.msra.mxu0 0
        %849 = vmatprep.subr.bf16.mxu0 0
        %850 = vmatpush1.bf16.msra.mxu0 0
        %851 = vmatprep.mubr.bf16.mxu0 0
        %852 = vmatmul.mubr.bf16.gmra.mrb[0].mxu0 %v369
        %v853 = vpop.f32.mrb[0].mxu0
        %v854 = vadd.f32 %v645, %v853
        %v855 = vpop.f32.mrb[0].mxu0
        %v856 = vpop.f32.mrb[0].mxu0
        %v857 = vadd.f32 %v648, %v856
        %v858 = vpop.f32.mrb[0].mxu0
        %859 = vmatprep.mubr.bf16.mxu0 0
        %860 = vmatmul.mubr.bf16.gmra.mrb[0].mxu0 %v370
        %v861 = vpop.f32.mrb[0].mxu0
        %v862 = vadd.f32 %v653, %v861
        %v863 = vpop.f32.mrb[0].mxu0
        %v864 = vpop.f32.mrb[0].mxu0
        %v865 = vadd.f32 %v656, %v864
        %v866 = vpop.f32.mrb[0].mxu0
        %867 = vmatprep.mubr.bf16.mxu0 0
        %868 = vmatmul.mubr.bf16.gmra.mrb[0].mxu0 %v371
        %v869 = vpop.f32.mrb[0].mxu0
        %v870 = vadd.f32 %v661, %v869
        %v871 = vpop.f32.mrb[0].mxu0
        %v872 = vpop.f32.mrb[0].mxu0
        %v873 = vadd.f32 %v664, %v872
        %v874 = vpop.f32.mrb[0].mxu0
        %875 = vmatprep.mubr.bf16.mxu0 0
        %876 = vmatmul.mubr.bf16.gmra.mrb[0].mxu0 %v372
        %v877 = vpop.f32.mrb[0].mxu0
        %v878 = vadd.f32 %v669, %v877
        %v879 = vpop.f32.mrb[0].mxu0
        %v880 = vpop.f32.mrb[0].mxu0
        %v881 = vadd.f32 %v672, %v880
        %v882 = vpop.f32.mrb[0].mxu0
        %883 = vmatprep.mubr.bf16.mxu0 0
        %884 = vmatmul.mubr.bf16.gmra.mrb[0].mxu0 %v373
        %v885 = vpop.f32.mrb[0].mxu0
        %v886 = vadd.f32 %v677, %v885
        %v887 = vpop.f32.mrb[0].mxu0
        %v888 = vpop.f32.mrb[0].mxu0
        %v889 = vadd.f32 %v680, %v888
        %v890 = vpop.f32.mrb[0].mxu0
        %891 = vmatprep.mubr.bf16.mxu0 0
        %892 = vmatmul.mubr.bf16.gmra.mrb[0].mxu0 %v374
        %v893 = vpop.f32.mrb[0].mxu0
        %v894 = vadd.f32 %v685, %v893
        %v895 = vpop.f32.mrb[0].mxu0
        %v896 = vpop.f32.mrb[0].mxu0
        %v897 = vadd.f32 %v688, %v896
        %v898 = vpop.f32.mrb[0].mxu0
        %899 = vmatprep.mubr.bf16.mxu0 0
        %900 = vmatmul.mubr.bf16.gmra.mrb[0].mxu0 %v375
        %v901 = vpop.f32.mrb[0].mxu0
        %v902 = vadd.f32 %v693, %v901
        %v903 = vpop.f32.mrb[0].mxu0
        %v904 = vpop.f32.mrb[0].mxu0
        %v905 = vadd.f32 %v696, %v904
        %v906 = vpop.f32.mrb[0].mxu0
        %907 = vmatprep.mubr.bf16.mxu0 0
        %908 = vmatmul.mubr.bf16.gmra.mrb[0].mxu0 %v376
        %v909 = vpop.f32.mrb[0].mxu0
        %v910 = vadd.f32 %v701, %v909
        %v911 = vpop.f32.mrb[0].mxu0
        %v912 = vpop.f32.mrb[0].mxu0
        %v913 = vadd.f32 %v704, %v912
        %v914 = vpop.f32.mrb[0].mxu0
        %915 = vmatprep.mubr.bf16.mxu0 0
        %916 = vmatmul.mubr.bf16.gmra.mrb[0].mxu0 %v377
        %v917 = vpop.f32.mrb[0].mxu0
        %v918 = vadd.f32 %v709, %v917
        %v919 = vpop.f32.mrb[0].mxu0
        %v920 = vpop.f32.mrb[0].mxu0
        %v921 = vadd.f32 %v712, %v920
        %v922 = vpop.f32.mrb[0].mxu0
        %923 = vmatprep.mubr.bf16.mxu0 0
        %924 = vmatmul.mubr.bf16.gmra.mrb[0].mxu0 %v378
        %v925 = vpop.f32.mrb[0].mxu0
        %v926 = vadd.f32 %v717, %v925
        %v927 = vpop.f32.mrb[0].mxu0
        %v928 = vpop.f32.mrb[0].mxu0
        %v929 = vadd.f32 %v720, %v928
        %v930 = vpop.f32.mrb[0].mxu0
        %931 = vmatprep.mubr.bf16.mxu0 0
        %932 = vmatmul.mubr.bf16.gmra.mrb[0].mxu0 %v379
        %v933 = vpop.f32.mrb[0].mxu0
        %v934 = vadd.f32 %v725, %v933
        %v935 = vpop.f32.mrb[0].mxu0
        %v936 = vpop.f32.mrb[0].mxu0
        %v937 = vadd.f32 %v728, %v936
        %v938 = vpop.f32.mrb[0].mxu0
        %939 = vmatprep.mubr.bf16.mxu0 0
        %940 = vmatmul.mubr.bf16.gmra.mrb[0].mxu0 %v380
        %v941 = vpop.f32.mrb[0].mxu0
        %v942 = vadd.f32 %v733, %v941
        %v943 = vpop.f32.mrb[0].mxu0
        %v944 = vpop.f32.mrb[0].mxu0
        %v945 = vadd.f32 %v736, %v944
        %v946 = vpop.f32.mrb[0].mxu0
        %947 = vmatprep.mubr.bf16.mxu0 0
        %948 = vmatmul.mubr.bf16.gmra.mrb[0].mxu0 %v381
        %v949 = vpop.f32.mrb[0].mxu0
        %v950 = vadd.f32 %v741, %v949
        %v951 = vpop.f32.mrb[0].mxu0
        %v952 = vpop.f32.mrb[0].mxu0
        %v953 = vadd.f32 %v744, %v952
        %v954 = vpop.f32.mrb[0].mxu0
        %955 = vmatprep.mubr.bf16.mxu0 0
        %956 = vmatmul.mubr.bf16.gmra.mrb[0].mxu0 %v382
        %v957 = vpop.f32.mrb[0].mxu0
        %v958 = vadd.f32 %v749, %v957
        %v959 = vpop.f32.mrb[0].mxu0
        %v960 = vpop.f32.mrb[0].mxu0
        %v961 = vadd.f32 %v752, %v960
        %v962 = vpop.f32.mrb[0].mxu0
        %963 = vmatprep.mubr.bf16.mxu0 0
        %964 = vmatmul.mubr.bf16.gmra.mrb[0].mxu0 %v383
        %v965 = vpop.f32.mrb[0].mxu0
        %v966 = vadd.f32 %v757, %v965
        %v967 = vpop.f32.mrb[0].mxu0
        %v968 = vpop.f32.mrb[0].mxu0
        %v969 = vadd.f32 %v760, %v968
        %v970 = vpop.f32.mrb[0].mxu0
        %971 = vmatprep.mubr.bf16.mxu0 0
        %972 = vmatmul.mubr.bf16.gmra.mrb[0].mxu0 %v384
        %v973 = vpop.f32.mrb[0].mxu0
        %v974 = vadd.f32 %v765, %v973
        %v975 = vpop.f32.mrb[0].mxu0
        %v976 = vpop.f32.mrb[0].mxu0
        %v977 = vadd.f32 %v768, %v976
        %v978 = vpop.f32.mrb[0].mxu0
        %979 = vdwg.mxu0
        %vm980 = vcmask 1045504
        %v981 = vrot.slane %v170, 2
        %v982 = vrot.slane %v171, 2
        %v983 = vsel %vm980, %v981, %v982
        %v984 = vrot.slane %v172, 2
        %v985 = vsel %vm980, %v982, %v984
        %v986 = vrot.slane %v173, 2
        %v987 = vrot.slane %v174, 2
        %v988 = vsel %vm980, %v986, %v987
        %v989 = vrot.slane %v175, 2
        %v990 = vsel %vm980, %v987, %v989
        %v991 = vrot.slane %v176, 2
        %v992 = vrot.slane %v177, 2
        %v993 = vsel %vm980, %v991, %v992
        %v994 = vrot.slane %v178, 2
        %v995 = vsel %vm980, %v992, %v994
        %v996 = vrot.slane %v179, 2
        %v997 = vrot.slane %v180, 2
        %v998 = vsel %vm980, %v996, %v997
        %v999 = vrot.slane %v181, 2
        %v1000 = vsel %vm980, %v997, %v999
        %v1001 = vrot.slane %v182, 2
        %v1002 = vrot.slane %v183, 2
        %v1003 = vsel %vm980, %v1001, %v1002
        %v1004 = vrot.slane %v184, 2
        %v1005 = vsel %vm980, %v1002, %v1004
        %v1006 = vrot.slane %v185, 2
        %v1007 = vrot.slane %v186, 2
        %v1008 = vsel %vm980, %v1006, %v1007
        %v1009 = vrot.slane %v187, 2
        %v1010 = vsel %vm980, %v1007, %v1009
        %v1011 = vrot.slane %v188, 2
        %v1012 = vrot.slane %v189, 2
        %v1013 = vsel %vm980, %v1011, %v1012
        %v1014 = vrot.slane %v190, 2
        %v1015 = vsel %vm980, %v1012, %v1014
        %v1016 = vrot.slane %v191, 2
        %v1017 = vrot.slane %v192, 2
        %v1018 = vsel %vm980, %v1016, %v1017
        %v1019 = vrot.slane %v193, 2
        %v1020 = vsel %vm980, %v1017, %v1019
        %v1021 = vrot.slane %v194, 2
        %v1022 = vrot.slane %v195, 2
        %v1023 = vsel %vm980, %v1021, %v1022
        %v1024 = vrot.slane %v196, 2
        %v1025 = vsel %vm980, %v1022, %v1024
        %v1026 = vrot.slane %v197, 2
        %v1027 = vrot.slane %v198, 2
        %v1028 = vsel %vm980, %v1026, %v1027
        %v1029 = vrot.slane %v199, 2
        %v1030 = vsel %vm980, %v1027, %v1029
        %v1031 = vrot.slane %v200, 2
        %v1032 = vrot.slane %v201, 2
        %v1033 = vsel %vm980, %v1031, %v1032
        %v1034 = vrot.slane %v202, 2
        %v1035 = vsel %vm980, %v1032, %v1034
        %v1036 = vrot.slane %v203, 2
        %v1037 = vrot.slane %v204, 2
        %v1038 = vsel %vm980, %v1036, %v1037
        %v1039 = vrot.slane %v205, 2
        %v1040 = vsel %vm980, %v1037, %v1039
        %v1041 = vrot.slane %v206, 2
        %v1042 = vrot.slane %v207, 2
        %v1043 = vsel %vm980, %v1041, %v1042
        %v1044 = vrot.slane %v208, 2
        %v1045 = vsel %vm980, %v1042, %v1044
        %v1046 = vrot.slane %v209, 2
        %v1047 = vrot.slane %v210, 2
        %v1048 = vsel %vm980, %v1046, %v1047
        %v1049 = vrot.slane %v211, 2
        %v1050 = vsel %vm980, %v1047, %v1049
        %v1051 = vrot.slane %v212, 2
        %v1052 = vrot.slane %v213, 2
        %v1053 = vsel %vm980, %v1051, %v1052
        %v1054 = vrot.slane %v214, 2
        %v1055 = vsel %vm980, %v1052, %v1054
        %v1056 = vrot.slane %v215, 2
        %v1057 = vrot.slane %v216, 2
        %v1058 = vsel %vm980, %v1056, %v1057
        %v1059 = vrot.slane %v217, 2
        %v1060 = vsel %vm980, %v1057, %v1059
        %v1093 = vpack.c.bf16 %v985, %v983
        %v1094 = vpack.c.bf16 %v990, %v988
        %v1095 = vpack.c.bf16 %v995, %v993
        %v1096 = vpack.c.bf16 %v1000, %v998
        %v1097 = vpack.c.bf16 %v1005, %v1003
        %v1098 = vpack.c.bf16 %v1010, %v1008
        %v1099 = vpack.c.bf16 %v1015, %v1013
        %v1100 = vpack.c.bf16 %v1020, %v1018
        %v1101 = vpack.c.bf16 %v1025, %v1023
        %v1102 = vpack.c.bf16 %v1030, %v1028
        %v1103 = vpack.c.bf16 %v1035, %v1033
        %v1104 = vpack.c.bf16 %v1040, %v1038
        %v1105 = vpack.c.bf16 %v1045, %v1043
        %v1106 = vpack.c.bf16 %v1050, %v1048
        %v1107 = vpack.c.bf16 %v1055, %v1053
        %v1108 = vpack.c.bf16 %v1060, %v1058
        %v1125 = vunpack.c.l.b16 %v256
        %v1126 = vunpack.c.l.b16 %v257
        %v1127 = vunpack.c.l.b16 %v258
        %v1128 = vunpack.c.l.b16 %v259
        %v1129 = vunpack.c.l.b16 %v260
        %v1130 = vunpack.c.l.b16 %v261
        %v1131 = vunpack.c.l.b16 %v262
        %v1132 = vunpack.c.l.b16 %v263
        %v1133 = vunpack.c.l.b16 %v264
        %v1134 = vunpack.c.l.b16 %v265
        %v1135 = vunpack.c.l.b16 %v266
        %v1136 = vunpack.c.l.b16 %v267
        %v1137 = vunpack.c.l.b16 %v268
        %v1138 = vunpack.c.l.b16 %v269
        %v1139 = vunpack.c.l.b16 %v270
        %v1140 = vunpack.c.l.b16 %v271
        %v1141 = vpack.c.b16 %v1126, %v1125
        %v1142 = vpack.c.b16 %v1128, %v1127
        %v1143 = vpack.c.b16 %v1130, %v1129
        %v1144 = vpack.c.b16 %v1132, %v1131
        %v1145 = vpack.c.b16 %v1134, %v1133
        %v1146 = vpack.c.b16 %v1136, %v1135
        %v1147 = vpack.c.b16 %v1138, %v1137
        %v1148 = vpack.c.b16 %v1140, %v1139
        %1157 = vmatprep.subr.bf16.mxu0 0
        %1158 = vmatpush1.bf16.msra.mxu0 %v1141
        %1159 = vmatprep.subr.bf16.mxu0 0
        %1160 = vmatpush1.bf16.msra.mxu0 %v1142
        %1161 = vmatprep.subr.bf16.mxu0 0
        %1162 = vmatpush1.bf16.msra.mxu0 %v1143
        %1163 = vmatprep.subr.bf16.mxu0 0
        %1164 = vmatpush1.bf16.msra.mxu0 %v1144
        %1165 = vmatprep.subr.bf16.mxu0 0
        %1166 = vmatpush1.bf16.msra.mxu0 %v1145
        %1167 = vmatprep.subr.bf16.mxu0 0
        %1168 = vmatpush1.bf16.msra.mxu0 %v1146
        %1169 = vmatprep.subr.bf16.mxu0 0
        %1170 = vmatpush1.bf16.msra.mxu0 %v1147
        %1171 = vmatprep.subr.bf16.mxu0 0
        %1172 = vmatpush1.bf16.msra.mxu0 %v1148
        %1173 = vmatprep.subr.bf16.mxu0 0
        %1174 = vmatpush1.bf16.msra.mxu0 0
        %1175 = vmatprep.subr.bf16.mxu0 0
        %1176 = vmatpush1.bf16.msra.mxu0 0
        %1177 = vmatprep.subr.bf16.mxu0 0
        %1178 = vmatpush1.bf16.msra.mxu0 0
        %1179 = vmatprep.subr.bf16.mxu0 0
        %1180 = vmatpush1.bf16.msra.mxu0 0
        %1181 = vmatprep.subr.bf16.mxu0 0
        %1182 = vmatpush1.bf16.msra.mxu0 0
        %1183 = vmatprep.subr.bf16.mxu0 0
        %1184 = vmatpush1.bf16.msra.mxu0 0
        %1185 = vmatprep.subr.bf16.mxu0 0
        %1186 = vmatpush1.bf16.msra.mxu0 0
        %1187 = vmatprep.subr.bf16.mxu0 0
        %1188 = vmatpush1.bf16.msra.mxu0 0
        %1189 = vmatprep.mubr.bf16.mxu0 0
        %1190 = vmatmul.mubr.bf16.gmra.mrb[0].mxu0 %v1093
        %v1191 = vpop.f32.mrb[0].mxu0
        %v1192 = vadd.f32 0.0, %v1191
        %v1193 = vpop.f32.mrb[0].mxu0
        %v1194 = vpop.f32.mrb[0].mxu0
        %v1195 = vadd.f32 0.0, %v1194
        %v1196 = vpop.f32.mrb[0].mxu0
        %1197 = vmatprep.mubr.bf16.mxu0 0
        %1198 = vmatmul.mubr.bf16.gmra.mrb[0].mxu0 %v1094
        %v1199 = vpop.f32.mrb[0].mxu0
        %v1200 = vadd.f32 0.0, %v1199
        %v1201 = vpop.f32.mrb[0].mxu0
        %v1202 = vpop.f32.mrb[0].mxu0
        %v1203 = vadd.f32 0.0, %v1202
        %v1204 = vpop.f32.mrb[0].mxu0
        %1205 = vmatprep.mubr.bf16.mxu0 0
        %1206 = vmatmul.mubr.bf16.gmra.mrb[0].mxu0 %v1095
        %v1207 = vpop.f32.mrb[0].mxu0
        %v1208 = vadd.f32 0.0, %v1207
        %v1209 = vpop.f32.mrb[0].mxu0
        %v1210 = vpop.f32.mrb[0].mxu0
        %v1211 = vadd.f32 0.0, %v1210
        %v1212 = vpop.f32.mrb[0].mxu0
        %1213 = vmatprep.mubr.bf16.mxu0 0
        %1214 = vmatmul.mubr.bf16.gmra.mrb[0].mxu0 %v1096
        %v1215 = vpop.f32.mrb[0].mxu0
        %v1216 = vadd.f32 0.0, %v1215
        %v1217 = vpop.f32.mrb[0].mxu0
        %v1218 = vpop.f32.mrb[0].mxu0
        %v1219 = vadd.f32 0.0, %v1218
        %v1220 = vpop.f32.mrb[0].mxu0
        %1221 = vmatprep.mubr.bf16.mxu0 0
        %1222 = vmatmul.mubr.bf16.gmra.mrb[0].mxu0 %v1097
        %v1223 = vpop.f32.mrb[0].mxu0
        %v1224 = vadd.f32 0.0, %v1223
        %v1225 = vpop.f32.mrb[0].mxu0
        %v1226 = vpop.f32.mrb[0].mxu0
        %v1227 = vadd.f32 0.0, %v1226
        %v1228 = vpop.f32.mrb[0].mxu0
        %1229 = vmatprep.mubr.bf16.mxu0 0
        %1230 = vmatmul.mubr.bf16.gmra.mrb[0].mxu0 %v1098
        %v1231 = vpop.f32.mrb[0].mxu0
        %v1232 = vadd.f32 0.0, %v1231
        %v1233 = vpop.f32.mrb[0].mxu0
        %v1234 = vpop.f32.mrb[0].mxu0
        %v1235 = vadd.f32 0.0, %v1234
        %v1236 = vpop.f32.mrb[0].mxu0
        %1237 = vmatprep.mubr.bf16.mxu0 0
        %1238 = vmatmul.mubr.bf16.gmra.mrb[0].mxu0 %v1099
        %v1239 = vpop.f32.mrb[0].mxu0
        %v1240 = vadd.f32 0.0, %v1239
        %v1241 = vpop.f32.mrb[0].mxu0
        %v1242 = vpop.f32.mrb[0].mxu0
        %v1243 = vadd.f32 0.0, %v1242
        %v1244 = vpop.f32.mrb[0].mxu0
        %1245 = vmatprep.mubr.bf16.mxu0 0
        %1246 = vmatmul.mubr.bf16.gmra.mrb[0].mxu0 %v1100
        %v1247 = vpop.f32.mrb[0].mxu0
        %v1248 = vadd.f32 0.0, %v1247
        %v1249 = vpop.f32.mrb[0].mxu0
        %v1250 = vpop.f32.mrb[0].mxu0
        %v1251 = vadd.f32 0.0, %v1250
        %v1252 = vpop.f32.mrb[0].mxu0
        %1253 = vmatprep.mubr.bf16.mxu0 0
        %1254 = vmatmul.mubr.bf16.gmra.mrb[0].mxu0 %v1101
        %v1255 = vpop.f32.mrb[0].mxu0
        %v1256 = vadd.f32 0.0, %v1255
        %v1257 = vpop.f32.mrb[0].mxu0
        %v1258 = vpop.f32.mrb[0].mxu0
        %v1259 = vadd.f32 0.0, %v1258
        %v1260 = vpop.f32.mrb[0].mxu0
        %1261 = vmatprep.mubr.bf16.mxu0 0
        %1262 = vmatmul.mubr.bf16.gmra.mrb[0].mxu0 %v1102
        %v1263 = vpop.f32.mrb[0].mxu0
        %v1264 = vadd.f32 0.0, %v1263
        %v1265 = vpop.f32.mrb[0].mxu0
        %v1266 = vpop.f32.mrb[0].mxu0
        %v1267 = vadd.f32 0.0, %v1266
        %v1268 = vpop.f32.mrb[0].mxu0
        %1269 = vmatprep.mubr.bf16.mxu0 0
        %1270 = vmatmul.mubr.bf16.gmra.mrb[0].mxu0 %v1103
        %v1271 = vpop.f32.mrb[0].mxu0
        %v1272 = vadd.f32 0.0, %v1271
        %v1273 = vpop.f32.mrb[0].mxu0
        %v1274 = vpop.f32.mrb[0].mxu0
        %v1275 = vadd.f32 0.0, %v1274
        %v1276 = vpop.f32.mrb[0].mxu0
        %1277 = vmatprep.mubr.bf16.mxu0 0
        %1278 = vmatmul.mubr.bf16.gmra.mrb[0].mxu0 %v1104
        %v1279 = vpop.f32.mrb[0].mxu0
        %v1280 = vadd.f32 0.0, %v1279
        %v1281 = vpop.f32.mrb[0].mxu0
        %v1282 = vpop.f32.mrb[0].mxu0
        %v1283 = vadd.f32 0.0, %v1282
        %v1284 = vpop.f32.mrb[0].mxu0
        %1285 = vmatprep.mubr.bf16.mxu0 0
        %1286 = vmatmul.mubr.bf16.gmra.mrb[0].mxu0 %v1105
        %v1287 = vpop.f32.mrb[0].mxu0
        %v1288 = vadd.f32 0.0, %v1287
        %v1289 = vpop.f32.mrb[0].mxu0
        %v1290 = vpop.f32.mrb[0].mxu0
        %v1291 = vadd.f32 0.0, %v1290
        %v1292 = vpop.f32.mrb[0].mxu0
        %1293 = vmatprep.mubr.bf16.mxu0 0
        %1294 = vmatmul.mubr.bf16.gmra.mrb[0].mxu0 %v1106
        %v1295 = vpop.f32.mrb[0].mxu0
        %v1296 = vadd.f32 0.0, %v1295
        %v1297 = vpop.f32.mrb[0].mxu0
        %v1298 = vpop.f32.mrb[0].mxu0
        %v1299 = vadd.f32 0.0, %v1298
        %v1300 = vpop.f32.mrb[0].mxu0
        %1301 = vmatprep.mubr.bf16.mxu0 0
        %1302 = vmatmul.mubr.bf16.gmra.mrb[0].mxu0 %v1107
        %v1303 = vpop.f32.mrb[0].mxu0
        %v1304 = vadd.f32 0.0, %v1303
        %v1305 = vpop.f32.mrb[0].mxu0
        %v1306 = vpop.f32.mrb[0].mxu0
        %v1307 = vadd.f32 0.0, %v1306
        %v1308 = vpop.f32.mrb[0].mxu0
        %1309 = vmatprep.mubr.bf16.mxu0 0
        %1310 = vmatmul.mubr.bf16.gmra.mrb[0].mxu0 %v1108
        %v1311 = vpop.f32.mrb[0].mxu0
        %v1312 = vadd.f32 0.0, %v1311
        %v1313 = vpop.f32.mrb[0].mxu0
        %v1314 = vpop.f32.mrb[0].mxu0
        %v1315 = vadd.f32 0.0, %v1314
        %v1316 = vpop.f32.mrb[0].mxu0
        %1317 = vdwg.mxu0
        %v1318 = vadd.f32 %v854, %v1192
        %v1319 = vadd.f32 %v857, %v1195
        %v1320 = vadd.f32 %v862, %v1200
        %v1321 = vadd.f32 %v865, %v1203
        %v1322 = vadd.f32 %v870, %v1208
        %v1323 = vadd.f32 %v873, %v1211
        %v1324 = vadd.f32 %v878, %v1216
        %v1325 = vadd.f32 %v881, %v1219
        %v1326 = vadd.f32 %v886, %v1224
        %v1327 = vadd.f32 %v889, %v1227
        %v1328 = vadd.f32 %v894, %v1232
        %v1329 = vadd.f32 %v897, %v1235
        %v1330 = vadd.f32 %v902, %v1240
        %v1331 = vadd.f32 %v905, %v1243
        %v1332 = vadd.f32 %v910, %v1248
        %v1333 = vadd.f32 %v913, %v1251
        %v1334 = vadd.f32 %v918, %v1256
        %v1335 = vadd.f32 %v921, %v1259
        %v1336 = vadd.f32 %v926, %v1264
        %v1337 = vadd.f32 %v929, %v1267
        %v1338 = vadd.f32 %v934, %v1272
        %v1339 = vadd.f32 %v937, %v1275
        %v1340 = vadd.f32 %v942, %v1280
        %v1341 = vadd.f32 %v945, %v1283
        %v1342 = vadd.f32 %v950, %v1288
        %v1343 = vadd.f32 %v953, %v1291
        %v1344 = vadd.f32 %v958, %v1296
        %v1345 = vadd.f32 %v961, %v1299
        %v1346 = vadd.f32 %v966, %v1304
        %v1347 = vadd.f32 %v969, %v1307
        %v1348 = vadd.f32 %v974, %v1312
        %v1349 = vadd.f32 %v977, %v1315
        %v1350 = vpack.c.bf16 %v219, %v218
        %v1367 = vunpack.c.l.b16 %v272
        %v1368 = vunpack.c.l.b16 %v273
        %v1369 = vunpack.c.l.b16 %v274
        %v1370 = vunpack.c.l.b16 %v275
        %v1371 = vunpack.c.l.b16 %v276
        %v1372 = vunpack.c.l.b16 %v277
        %v1373 = vunpack.c.l.b16 %v278
        %v1374 = vunpack.c.l.b16 %v279
        %v1375 = vunpack.c.l.b16 %v280
        %v1376 = vunpack.c.l.b16 %v281
        %v1377 = vunpack.c.l.b16 %v282
        %v1378 = vunpack.c.l.b16 %v283
        %v1379 = vunpack.c.l.b16 %v284
        %v1380 = vunpack.c.l.b16 %v285
        %v1381 = vunpack.c.l.b16 %v286
        %v1382 = vunpack.c.l.b16 %v287
        %v1383 = vpack.c.b16 %v1368, %v1367
        %v1384 = vpack.c.b16 %v1370, %v1369
        %v1385 = vpack.c.b16 %v1372, %v1371
        %v1386 = vpack.c.b16 %v1374, %v1373
        %v1387 = vpack.c.b16 %v1376, %v1375
        %v1388 = vpack.c.b16 %v1378, %v1377
        %v1389 = vpack.c.b16 %v1380, %v1379
        %v1390 = vpack.c.b16 %v1382, %v1381
        %1399 = vmatprep.subr.bf16.mxu0 0
        %1400 = vmatpush1.bf16.msra.mxu0 %v1383
        %1401 = vmatprep.subr.bf16.mxu0 0
        %1402 = vmatpush1.bf16.msra.mxu0 %v1384
        %1403 = vmatprep.subr.bf16.mxu0 0
        %1404 = vmatpush1.bf16.msra.mxu0 %v1385
        %1405 = vmatprep.subr.bf16.mxu0 0
        %1406 = vmatpush1.bf16.msra.mxu0 %v1386
        %1407 = vmatprep.subr.bf16.mxu0 0
        %1408 = vmatpush1.bf16.msra.mxu0 %v1387
        %1409 = vmatprep.subr.bf16.mxu0 0
        %1410 = vmatpush1.bf16.msra.mxu0 %v1388
        %1411 = vmatprep.subr.bf16.mxu0 0
        %1412 = vmatpush1.bf16.msra.mxu0 %v1389
        %1413 = vmatprep.subr.bf16.mxu0 0
        %1414 = vmatpush1.bf16.msra.mxu0 %v1390
        %1415 = vmatprep.subr.bf16.mxu0 0
        %1416 = vmatpush1.bf16.msra.mxu0 0
        %1417 = vmatprep.subr.bf16.mxu0 0
        %1418 = vmatpush1.bf16.msra.mxu0 0
        %1419 = vmatprep.subr.bf16.mxu0 0
        %1420 = vmatpush1.bf16.msra.mxu0 0
        %1421 = vmatprep.subr.bf16.mxu0 0
        %1422 = vmatpush1.bf16.msra.mxu0 0
        %1423 = vmatprep.subr.bf16.mxu0 0
        %1424 = vmatpush1.bf16.msra.mxu0 0
        %1425 = vmatprep.subr.bf16.mxu0 0
        %1426 = vmatpush1.bf16.msra.mxu0 0
        %1427 = vmatprep.subr.bf16.mxu0 0
        %1428 = vmatpush1.bf16.msra.mxu0 0
        %1429 = vmatprep.subr.bf16.mxu0 0
        %1430 = vmatpush1.bf16.msra.mxu0 0
        %1431 = vmatprep.mubr.bf16.mxu0 0
        %1432 = vmatmul.mubr.bf16.gmra.mrb[0].mxu0 %v370
        %v1433 = vpop.f32.mrb[0].mxu0
        %v1434 = vadd.f32 0.0, %v1433
        %v1435 = vpop.f32.mrb[0].mxu0
        %v1436 = vpop.f32.mrb[0].mxu0
        %v1437 = vadd.f32 0.0, %v1436
        %v1438 = vpop.f32.mrb[0].mxu0
        %1439 = vmatprep.mubr.bf16.mxu0 0
        %1440 = vmatmul.mubr.bf16.gmra.mrb[0].mxu0 %v371
        %v1441 = vpop.f32.mrb[0].mxu0
        %v1442 = vadd.f32 0.0, %v1441
        %v1443 = vpop.f32.mrb[0].mxu0
        %v1444 = vpop.f32.mrb[0].mxu0
        %v1445 = vadd.f32 0.0, %v1444
        %v1446 = vpop.f32.mrb[0].mxu0
        %1447 = vmatprep.mubr.bf16.mxu0 0
        %1448 = vmatmul.mubr.bf16.gmra.mrb[0].mxu0 %v372
        %v1449 = vpop.f32.mrb[0].mxu0
        %v1450 = vadd.f32 0.0, %v1449
        %v1451 = vpop.f32.mrb[0].mxu0
        %v1452 = vpop.f32.mrb[0].mxu0
        %v1453 = vadd.f32 0.0, %v1452
        %v1454 = vpop.f32.mrb[0].mxu0
        %1455 = vmatprep.mubr.bf16.mxu0 0
        %1456 = vmatmul.mubr.bf16.gmra.mrb[0].mxu0 %v373
        %v1457 = vpop.f32.mrb[0].mxu0
        %v1458 = vadd.f32 0.0, %v1457
        %v1459 = vpop.f32.mrb[0].mxu0
        %v1460 = vpop.f32.mrb[0].mxu0
        %v1461 = vadd.f32 0.0, %v1460
        %v1462 = vpop.f32.mrb[0].mxu0
        %1463 = vmatprep.mubr.bf16.mxu0 0
        %1464 = vmatmul.mubr.bf16.gmra.mrb[0].mxu0 %v374
        %v1465 = vpop.f32.mrb[0].mxu0
        %v1466 = vadd.f32 0.0, %v1465
        %v1467 = vpop.f32.mrb[0].mxu0
        %v1468 = vpop.f32.mrb[0].mxu0
        %v1469 = vadd.f32 0.0, %v1468
        %v1470 = vpop.f32.mrb[0].mxu0
        %1471 = vmatprep.mubr.bf16.mxu0 0
        %1472 = vmatmul.mubr.bf16.gmra.mrb[0].mxu0 %v375
        %v1473 = vpop.f32.mrb[0].mxu0
        %v1474 = vadd.f32 0.0, %v1473
        %v1475 = vpop.f32.mrb[0].mxu0
        %v1476 = vpop.f32.mrb[0].mxu0
        %v1477 = vadd.f32 0.0, %v1476
        %v1478 = vpop.f32.mrb[0].mxu0
        %1479 = vmatprep.mubr.bf16.mxu0 0
        %1480 = vmatmul.mubr.bf16.gmra.mrb[0].mxu0 %v376
        %v1481 = vpop.f32.mrb[0].mxu0
        %v1482 = vadd.f32 0.0, %v1481
        %v1483 = vpop.f32.mrb[0].mxu0
        %v1484 = vpop.f32.mrb[0].mxu0
        %v1485 = vadd.f32 0.0, %v1484
        %v1486 = vpop.f32.mrb[0].mxu0
        %1487 = vmatprep.mubr.bf16.mxu0 0
        %1488 = vmatmul.mubr.bf16.gmra.mrb[0].mxu0 %v377
        %v1489 = vpop.f32.mrb[0].mxu0
        %v1490 = vadd.f32 0.0, %v1489
        %v1491 = vpop.f32.mrb[0].mxu0
        %v1492 = vpop.f32.mrb[0].mxu0
        %v1493 = vadd.f32 0.0, %v1492
        %v1494 = vpop.f32.mrb[0].mxu0
        %1495 = vmatprep.mubr.bf16.mxu0 0
        %1496 = vmatmul.mubr.bf16.gmra.mrb[0].mxu0 %v378
        %v1497 = vpop.f32.mrb[0].mxu0
        %v1498 = vadd.f32 0.0, %v1497
        %v1499 = vpop.f32.mrb[0].mxu0
        %v1500 = vpop.f32.mrb[0].mxu0
        %v1501 = vadd.f32 0.0, %v1500
        %v1502 = vpop.f32.mrb[0].mxu0
        %1503 = vmatprep.mubr.bf16.mxu0 0
        %1504 = vmatmul.mubr.bf16.gmra.mrb[0].mxu0 %v379
        %v1505 = vpop.f32.mrb[0].mxu0
        %v1506 = vadd.f32 0.0, %v1505
        %v1507 = vpop.f32.mrb[0].mxu0
        %v1508 = vpop.f32.mrb[0].mxu0
        %v1509 = vadd.f32 0.0, %v1508
        %v1510 = vpop.f32.mrb[0].mxu0
        %1511 = vmatprep.mubr.bf16.mxu0 0
        %1512 = vmatmul.mubr.bf16.gmra.mrb[0].mxu0 %v380
        %v1513 = vpop.f32.mrb[0].mxu0
        %v1514 = vadd.f32 0.0, %v1513
        %v1515 = vpop.f32.mrb[0].mxu0
        %v1516 = vpop.f32.mrb[0].mxu0
        %v1517 = vadd.f32 0.0, %v1516
        %v1518 = vpop.f32.mrb[0].mxu0
        %1519 = vmatprep.mubr.bf16.mxu0 0
        %1520 = vmatmul.mubr.bf16.gmra.mrb[0].mxu0 %v381
        %v1521 = vpop.f32.mrb[0].mxu0
        %v1522 = vadd.f32 0.0, %v1521
        %v1523 = vpop.f32.mrb[0].mxu0
        %v1524 = vpop.f32.mrb[0].mxu0
        %v1525 = vadd.f32 0.0, %v1524
        %v1526 = vpop.f32.mrb[0].mxu0
        %1527 = vmatprep.mubr.bf16.mxu0 0
        %1528 = vmatmul.mubr.bf16.gmra.mrb[0].mxu0 %v382
        %v1529 = vpop.f32.mrb[0].mxu0
        %v1530 = vadd.f32 0.0, %v1529
        %v1531 = vpop.f32.mrb[0].mxu0
        %v1532 = vpop.f32.mrb[0].mxu0
        %v1533 = vadd.f32 0.0, %v1532
        %v1534 = vpop.f32.mrb[0].mxu0
        %1535 = vmatprep.mubr.bf16.mxu0 0
        %1536 = vmatmul.mubr.bf16.gmra.mrb[0].mxu0 %v383
        %v1537 = vpop.f32.mrb[0].mxu0
        %v1538 = vadd.f32 0.0, %v1537
        %v1539 = vpop.f32.mrb[0].mxu0
        %v1540 = vpop.f32.mrb[0].mxu0
        %v1541 = vadd.f32 0.0, %v1540
        %v1542 = vpop.f32.mrb[0].mxu0
        %1543 = vmatprep.mubr.bf16.mxu0 0
        %1544 = vmatmul.mubr.bf16.gmra.mrb[0].mxu0 %v384
        %v1545 = vpop.f32.mrb[0].mxu0
        %v1546 = vadd.f32 0.0, %v1545
        %v1547 = vpop.f32.mrb[0].mxu0
        %v1548 = vpop.f32.mrb[0].mxu0
        %v1549 = vadd.f32 0.0, %v1548
        %v1550 = vpop.f32.mrb[0].mxu0
        %1551 = vmatprep.mubr.bf16.mxu0 0
        %1552 = vmatmul.mubr.bf16.gmra.mrb[0].mxu0 %v1350
        %v1553 = vpop.f32.mrb[0].mxu0
        %v1554 = vadd.f32 0.0, %v1553
        %v1555 = vpop.f32.mrb[0].mxu0
        %v1556 = vpop.f32.mrb[0].mxu0
        %v1557 = vadd.f32 0.0, %v1556
        %v1558 = vpop.f32.mrb[0].mxu0
        %1559 = vdwg.mxu0
        %v1560 = vadd.f32 %v1318, %v1434
        %v1561 = vadd.f32 %v1319, %v1437
        %v1562 = vadd.f32 %v1320, %v1442
        %v1563 = vadd.f32 %v1321, %v1445
        %v1564 = vadd.f32 %v1322, %v1450
        %v1565 = vadd.f32 %v1323, %v1453
        %v1566 = vadd.f32 %v1324, %v1458
        %v1567 = vadd.f32 %v1325, %v1461
        %v1568 = vadd.f32 %v1326, %v1466
        %v1569 = vadd.f32 %v1327, %v1469
        %v1570 = vadd.f32 %v1328, %v1474
        %v1571 = vadd.f32 %v1329, %v1477
        %v1572 = vadd.f32 %v1330, %v1482
        %v1573 = vadd.f32 %v1331, %v1485
        %v1574 = vadd.f32 %v1332, %v1490
        %v1575 = vadd.f32 %v1333, %v1493
        %v1576 = vadd.f32 %v1334, %v1498
        %v1577 = vadd.f32 %v1335, %v1501
        %v1578 = vadd.f32 %v1336, %v1506
        %v1579 = vadd.f32 %v1337, %v1509
        %v1580 = vadd.f32 %v1338, %v1514
        %v1581 = vadd.f32 %v1339, %v1517
        %v1582 = vadd.f32 %v1340, %v1522
        %v1583 = vadd.f32 %v1341, %v1525
        %v1584 = vadd.f32 %v1342, %v1530
        %v1585 = vadd.f32 %v1343, %v1533
        %v1586 = vadd.f32 %v1344, %v1538
        %v1587 = vadd.f32 %v1345, %v1541
        %v1588 = vadd.f32 %v1346, %v1546
        %v1589 = vadd.f32 %v1347, %v1549
        %v1590 = vadd.f32 %v1348, %v1554
        %v1591 = vadd.f32 %v1349, %v1557
        %v1595 = vrot.slane %v218, 1
        %v1596 = vrot.slane %v219, 1
        %v1597 = vsel %vm433, %v1595, %v1596
        %v1598 = vrot.slane %v220, 1
        %v1599 = vsel %vm433, %v1596, %v1598
        %v1602 = vpack.c.bf16 %v1599, %v1597
        %v1619 = vunpack.c.l.b16 %v288
        %v1620 = vunpack.c.l.b16 %v289
        %v1621 = vunpack.c.l.b16 %v290
        %v1622 = vunpack.c.l.b16 %v291
        %v1623 = vunpack.c.l.b16 %v292
        %v1624 = vunpack.c.l.b16 %v293
        %v1625 = vunpack.c.l.b16 %v294
        %v1626 = vunpack.c.l.b16 %v295
        %v1627 = vunpack.c.l.b16 %v296
        %v1628 = vunpack.c.l.b16 %v297
        %v1629 = vunpack.c.l.b16 %v298
        %v1630 = vunpack.c.l.b16 %v299
        %v1631 = vunpack.c.l.b16 %v300
        %v1632 = vunpack.c.l.b16 %v301
        %v1633 = vunpack.c.l.b16 %v302
        %v1634 = vunpack.c.l.b16 %v303
        %v1635 = vpack.c.b16 %v1620, %v1619
        %v1636 = vpack.c.b16 %v1622, %v1621
        %v1637 = vpack.c.b16 %v1624, %v1623
        %v1638 = vpack.c.b16 %v1626, %v1625
        %v1639 = vpack.c.b16 %v1628, %v1627
        %v1640 = vpack.c.b16 %v1630, %v1629
        %v1641 = vpack.c.b16 %v1632, %v1631
        %v1642 = vpack.c.b16 %v1634, %v1633
        %1651 = vmatprep.subr.bf16.mxu0 0
        %1652 = vmatpush1.bf16.msra.mxu0 %v1635
        %1653 = vmatprep.subr.bf16.mxu0 0
        %1654 = vmatpush1.bf16.msra.mxu0 %v1636
        %1655 = vmatprep.subr.bf16.mxu0 0
        %1656 = vmatpush1.bf16.msra.mxu0 %v1637
        %1657 = vmatprep.subr.bf16.mxu0 0
        %1658 = vmatpush1.bf16.msra.mxu0 %v1638
        %1659 = vmatprep.subr.bf16.mxu0 0
        %1660 = vmatpush1.bf16.msra.mxu0 %v1639
        %1661 = vmatprep.subr.bf16.mxu0 0
        %1662 = vmatpush1.bf16.msra.mxu0 %v1640
        %1663 = vmatprep.subr.bf16.mxu0 0
        %1664 = vmatpush1.bf16.msra.mxu0 %v1641
        %1665 = vmatprep.subr.bf16.mxu0 0
        %1666 = vmatpush1.bf16.msra.mxu0 %v1642
        %1667 = vmatprep.subr.bf16.mxu0 0
        %1668 = vmatpush1.bf16.msra.mxu0 0
        %1669 = vmatprep.subr.bf16.mxu0 0
        %1670 = vmatpush1.bf16.msra.mxu0 0
        %1671 = vmatprep.subr.bf16.mxu0 0
        %1672 = vmatpush1.bf16.msra.mxu0 0
        %1673 = vmatprep.subr.bf16.mxu0 0
        %1674 = vmatpush1.bf16.msra.mxu0 0
        %1675 = vmatprep.subr.bf16.mxu0 0
        %1676 = vmatpush1.bf16.msra.mxu0 0
        %1677 = vmatprep.subr.bf16.mxu0 0
        %1678 = vmatpush1.bf16.msra.mxu0 0
        %1679 = vmatprep.subr.bf16.mxu0 0
        %1680 = vmatpush1.bf16.msra.mxu0 0
        %1681 = vmatprep.subr.bf16.mxu0 0
        %1682 = vmatpush1.bf16.msra.mxu0 0
        %1683 = vmatprep.mubr.bf16.mxu0 0
        %1684 = vmatmul.mubr.bf16.gmra.mrb[0].mxu0 %v547
        %v1685 = vpop.f32.mrb[0].mxu0
        %v1686 = vadd.f32 0.0, %v1685
        %v1687 = vpop.f32.mrb[0].mxu0
        %v1688 = vpop.f32.mrb[0].mxu0
        %v1689 = vadd.f32 0.0, %v1688
        %v1690 = vpop.f32.mrb[0].mxu0
        %1691 = vmatprep.mubr.bf16.mxu0 0
        %1692 = vmatmul.mubr.bf16.gmra.mrb[0].mxu0 %v548
        %v1693 = vpop.f32.mrb[0].mxu0
        %v1694 = vadd.f32 0.0, %v1693
        %v1695 = vpop.f32.mrb[0].mxu0
        %v1696 = vpop.f32.mrb[0].mxu0
        %v1697 = vadd.f32 0.0, %v1696
        %v1698 = vpop.f32.mrb[0].mxu0
        %1699 = vmatprep.mubr.bf16.mxu0 0
        %1700 = vmatmul.mubr.bf16.gmra.mrb[0].mxu0 %v549
        %v1701 = vpop.f32.mrb[0].mxu0
        %v1702 = vadd.f32 0.0, %v1701
        %v1703 = vpop.f32.mrb[0].mxu0
        %v1704 = vpop.f32.mrb[0].mxu0
        %v1705 = vadd.f32 0.0, %v1704
        %v1706 = vpop.f32.mrb[0].mxu0
        %1707 = vmatprep.mubr.bf16.mxu0 0
        %1708 = vmatmul.mubr.bf16.gmra.mrb[0].mxu0 %v550
        %v1709 = vpop.f32.mrb[0].mxu0
        %v1710 = vadd.f32 0.0, %v1709
        %v1711 = vpop.f32.mrb[0].mxu0
        %v1712 = vpop.f32.mrb[0].mxu0
        %v1713 = vadd.f32 0.0, %v1712
        %v1714 = vpop.f32.mrb[0].mxu0
        %1715 = vmatprep.mubr.bf16.mxu0 0
        %1716 = vmatmul.mubr.bf16.gmra.mrb[0].mxu0 %v551
        %v1717 = vpop.f32.mrb[0].mxu0
        %v1718 = vadd.f32 0.0, %v1717
        %v1719 = vpop.f32.mrb[0].mxu0
        %v1720 = vpop.f32.mrb[0].mxu0
        %v1721 = vadd.f32 0.0, %v1720
        %v1722 = vpop.f32.mrb[0].mxu0
        %1723 = vmatprep.mubr.bf16.mxu0 0
        %1724 = vmatmul.mubr.bf16.gmra.mrb[0].mxu0 %v552
        %v1725 = vpop.f32.mrb[0].mxu0
        %v1726 = vadd.f32 0.0, %v1725
        %v1727 = vpop.f32.mrb[0].mxu0
        %v1728 = vpop.f32.mrb[0].mxu0
        %v1729 = vadd.f32 0.0, %v1728
        %v1730 = vpop.f32.mrb[0].mxu0
        %1731 = vmatprep.mubr.bf16.mxu0 0
        %1732 = vmatmul.mubr.bf16.gmra.mrb[0].mxu0 %v553
        %v1733 = vpop.f32.mrb[0].mxu0
        %v1734 = vadd.f32 0.0, %v1733
        %v1735 = vpop.f32.mrb[0].mxu0
        %v1736 = vpop.f32.mrb[0].mxu0
        %v1737 = vadd.f32 0.0, %v1736
        %v1738 = vpop.f32.mrb[0].mxu0
        %1739 = vmatprep.mubr.bf16.mxu0 0
        %1740 = vmatmul.mubr.bf16.gmra.mrb[0].mxu0 %v554
        %v1741 = vpop.f32.mrb[0].mxu0
        %v1742 = vadd.f32 0.0, %v1741
        %v1743 = vpop.f32.mrb[0].mxu0
        %v1744 = vpop.f32.mrb[0].mxu0
        %v1745 = vadd.f32 0.0, %v1744
        %v1746 = vpop.f32.mrb[0].mxu0
        %1747 = vmatprep.mubr.bf16.mxu0 0
        %1748 = vmatmul.mubr.bf16.gmra.mrb[0].mxu0 %v555
        %v1749 = vpop.f32.mrb[0].mxu0
        %v1750 = vadd.f32 0.0, %v1749
        %v1751 = vpop.f32.mrb[0].mxu0
        %v1752 = vpop.f32.mrb[0].mxu0
        %v1753 = vadd.f32 0.0, %v1752
        %v1754 = vpop.f32.mrb[0].mxu0
        %1755 = vmatprep.mubr.bf16.mxu0 0
        %1756 = vmatmul.mubr.bf16.gmra.mrb[0].mxu0 %v556
        %v1757 = vpop.f32.mrb[0].mxu0
        %v1758 = vadd.f32 0.0, %v1757
        %v1759 = vpop.f32.mrb[0].mxu0
        %v1760 = vpop.f32.mrb[0].mxu0
        %v1761 = vadd.f32 0.0, %v1760
        %v1762 = vpop.f32.mrb[0].mxu0
        %1763 = vmatprep.mubr.bf16.mxu0 0
        %1764 = vmatmul.mubr.bf16.gmra.mrb[0].mxu0 %v557
        %v1765 = vpop.f32.mrb[0].mxu0
        %v1766 = vadd.f32 0.0, %v1765
        %v1767 = vpop.f32.mrb[0].mxu0
        %v1768 = vpop.f32.mrb[0].mxu0
        %v1769 = vadd.f32 0.0, %v1768
        %v1770 = vpop.f32.mrb[0].mxu0
        %1771 = vmatprep.mubr.bf16.mxu0 0
        %1772 = vmatmul.mubr.bf16.gmra.mrb[0].mxu0 %v558
        %v1773 = vpop.f32.mrb[0].mxu0
        %v1774 = vadd.f32 0.0, %v1773
        %v1775 = vpop.f32.mrb[0].mxu0
        %v1776 = vpop.f32.mrb[0].mxu0
        %v1777 = vadd.f32 0.0, %v1776
        %v1778 = vpop.f32.mrb[0].mxu0
        %1779 = vmatprep.mubr.bf16.mxu0 0
        %1780 = vmatmul.mubr.bf16.gmra.mrb[0].mxu0 %v559
        %v1781 = vpop.f32.mrb[0].mxu0
        %v1782 = vadd.f32 0.0, %v1781
        %v1783 = vpop.f32.mrb[0].mxu0
        %v1784 = vpop.f32.mrb[0].mxu0
        %v1785 = vadd.f32 0.0, %v1784
        %v1786 = vpop.f32.mrb[0].mxu0
        %1787 = vmatprep.mubr.bf16.mxu0 0
        %1788 = vmatmul.mubr.bf16.gmra.mrb[0].mxu0 %v560
        %v1789 = vpop.f32.mrb[0].mxu0
        %v1790 = vadd.f32 0.0, %v1789
        %v1791 = vpop.f32.mrb[0].mxu0
        %v1792 = vpop.f32.mrb[0].mxu0
        %v1793 = vadd.f32 0.0, %v1792
        %v1794 = vpop.f32.mrb[0].mxu0
        %1795 = vmatprep.mubr.bf16.mxu0 0
        %1796 = vmatmul.mubr.bf16.gmra.mrb[0].mxu0 %v561
        %v1797 = vpop.f32.mrb[0].mxu0
        %v1798 = vadd.f32 0.0, %v1797
        %v1799 = vpop.f32.mrb[0].mxu0
        %v1800 = vpop.f32.mrb[0].mxu0
        %v1801 = vadd.f32 0.0, %v1800
        %v1802 = vpop.f32.mrb[0].mxu0
        %1803 = vmatprep.mubr.bf16.mxu0 0
        %1804 = vmatmul.mubr.bf16.gmra.mrb[0].mxu0 %v1602
        %v1805 = vpop.f32.mrb[0].mxu0
        %v1806 = vadd.f32 0.0, %v1805
        %v1807 = vpop.f32.mrb[0].mxu0
        %v1808 = vpop.f32.mrb[0].mxu0
        %v1809 = vadd.f32 0.0, %v1808
        %v1810 = vpop.f32.mrb[0].mxu0
        %1811 = vdwg.mxu0
        %v1812 = vadd.f32 %v1560, %v1686
        %v1813 = vadd.f32 %v1561, %v1689
        %v1814 = vadd.f32 %v1562, %v1694
        %v1815 = vadd.f32 %v1563, %v1697
        %v1816 = vadd.f32 %v1564, %v1702
        %v1817 = vadd.f32 %v1565, %v1705
        %v1818 = vadd.f32 %v1566, %v1710
        %v1819 = vadd.f32 %v1567, %v1713
        %v1820 = vadd.f32 %v1568, %v1718
        %v1821 = vadd.f32 %v1569, %v1721
        %v1822 = vadd.f32 %v1570, %v1726
        %v1823 = vadd.f32 %v1571, %v1729
        %v1824 = vadd.f32 %v1572, %v1734
        %v1825 = vadd.f32 %v1573, %v1737
        %v1826 = vadd.f32 %v1574, %v1742
        %v1827 = vadd.f32 %v1575, %v1745
        %v1828 = vadd.f32 %v1576, %v1750
        %v1829 = vadd.f32 %v1577, %v1753
        %v1830 = vadd.f32 %v1578, %v1758
        %v1831 = vadd.f32 %v1579, %v1761
        %v1832 = vadd.f32 %v1580, %v1766
        %v1833 = vadd.f32 %v1581, %v1769
        %v1834 = vadd.f32 %v1582, %v1774
        %v1835 = vadd.f32 %v1583, %v1777
        %v1836 = vadd.f32 %v1584, %v1782
        %v1837 = vadd.f32 %v1585, %v1785
        %v1838 = vadd.f32 %v1586, %v1790
        %v1839 = vadd.f32 %v1587, %v1793
        %v1840 = vadd.f32 %v1588, %v1798
        %v1841 = vadd.f32 %v1589, %v1801
        %v1842 = vadd.f32 %v1590, %v1806
        %v1843 = vadd.f32 %v1591, %v1809
        %v1844 = vrot.slane %v218, 2
        %v1845 = vrot.slane %v219, 2
        %v1846 = vsel %vm980, %v1844, %v1845
        %v1847 = vrot.slane %v220, 2
        %v1848 = vsel %vm980, %v1845, %v1847
        %v1851 = vpack.c.bf16 %v1848, %v1846
        %v1868 = vunpack.c.l.b16 %v304
        %v1869 = vunpack.c.l.b16 %v305
        %v1870 = vunpack.c.l.b16 %v306
        %v1871 = vunpack.c.l.b16 %v307
        %v1872 = vunpack.c.l.b16 %v308
        %v1873 = vunpack.c.l.b16 %v309
        %v1874 = vunpack.c.l.b16 %v310
        %v1875 = vunpack.c.l.b16 %v311
        %v1876 = vunpack.c.l.b16 %v312
        %v1877 = vunpack.c.l.b16 %v313
        %v1878 = vunpack.c.l.b16 %v314
        %v1879 = vunpack.c.l.b16 %v315
        %v1880 = vunpack.c.l.b16 %v316
        %v1881 = vunpack.c.l.b16 %v317
        %v1882 = vunpack.c.l.b16 %v318
        %v1883 = vunpack.c.l.b16 %v319
        %v1884 = vpack.c.b16 %v1869, %v1868
        %v1885 = vpack.c.b16 %v1871, %v1870
        %v1886 = vpack.c.b16 %v1873, %v1872
        %v1887 = vpack.c.b16 %v1875, %v1874
        %v1888 = vpack.c.b16 %v1877, %v1876
        %v1889 = vpack.c.b16 %v1879, %v1878
        %v1890 = vpack.c.b16 %v1881, %v1880
        %v1891 = vpack.c.b16 %v1883, %v1882
        %1900 = vmatprep.subr.bf16.mxu0 0
        %1901 = vmatpush1.bf16.msra.mxu0 %v1884
        %1902 = vmatprep.subr.bf16.mxu0 0
        %1903 = vmatpush1.bf16.msra.mxu0 %v1885
        %1904 = vmatprep.subr.bf16.mxu0 0
        %1905 = vmatpush1.bf16.msra.mxu0 %v1886
        %1906 = vmatprep.subr.bf16.mxu0 0
        %1907 = vmatpush1.bf16.msra.mxu0 %v1887
        %1908 = vmatprep.subr.bf16.mxu0 0
        %1909 = vmatpush1.bf16.msra.mxu0 %v1888
        %1910 = vmatprep.subr.bf16.mxu0 0
        %1911 = vmatpush1.bf16.msra.mxu0 %v1889
        %1912 = vmatprep.subr.bf16.mxu0 0
        %1913 = vmatpush1.bf16.msra.mxu0 %v1890
        %1914 = vmatprep.subr.bf16.mxu0 0
        %1915 = vmatpush1.bf16.msra.mxu0 %v1891
        %1916 = vmatprep.subr.bf16.mxu0 0
        %1917 = vmatpush1.bf16.msra.mxu0 0
        %1918 = vmatprep.subr.bf16.mxu0 0
        %1919 = vmatpush1.bf16.msra.mxu0 0
        %1920 = vmatprep.subr.bf16.mxu0 0
        %1921 = vmatpush1.bf16.msra.mxu0 0
        %1922 = vmatprep.subr.bf16.mxu0 0
        %1923 = vmatpush1.bf16.msra.mxu0 0
        %1924 = vmatprep.subr.bf16.mxu0 0
        %1925 = vmatpush1.bf16.msra.mxu0 0
        %1926 = vmatprep.subr.bf16.mxu0 0
        %1927 = vmatpush1.bf16.msra.mxu0 0
        %1928 = vmatprep.subr.bf16.mxu0 0
        %1929 = vmatpush1.bf16.msra.mxu0 0
        %1930 = vmatprep.subr.bf16.mxu0 0
        %1931 = vmatpush1.bf16.msra.mxu0 0
        %1932 = vmatprep.mubr.bf16.mxu0 0
        %1933 = vmatmul.mubr.bf16.gmra.mrb[0].mxu0 %v1094
        %v1934 = vpop.f32.mrb[0].mxu0
        %v1935 = vadd.f32 0.0, %v1934
        %v1936 = vpop.f32.mrb[0].mxu0
        %v1937 = vpop.f32.mrb[0].mxu0
        %v1938 = vadd.f32 0.0, %v1937
        %v1939 = vpop.f32.mrb[0].mxu0
        %1940 = vmatprep.mubr.bf16.mxu0 0
        %1941 = vmatmul.mubr.bf16.gmra.mrb[0].mxu0 %v1095
        %v1942 = vpop.f32.mrb[0].mxu0
        %v1943 = vadd.f32 0.0, %v1942
        %v1944 = vpop.f32.mrb[0].mxu0
        %v1945 = vpop.f32.mrb[0].mxu0
        %v1946 = vadd.f32 0.0, %v1945
        %v1947 = vpop.f32.mrb[0].mxu0
        %1948 = vmatprep.mubr.bf16.mxu0 0
        %1949 = vmatmul.mubr.bf16.gmra.mrb[0].mxu0 %v1096
        %v1950 = vpop.f32.mrb[0].mxu0
        %v1951 = vadd.f32 0.0, %v1950
        %v1952 = vpop.f32.mrb[0].mxu0
        %v1953 = vpop.f32.mrb[0].mxu0
        %v1954 = vadd.f32 0.0, %v1953
        %v1955 = vpop.f32.mrb[0].mxu0
        %1956 = vmatprep.mubr.bf16.mxu0 0
        %1957 = vmatmul.mubr.bf16.gmra.mrb[0].mxu0 %v1097
        %v1958 = vpop.f32.mrb[0].mxu0
        %v1959 = vadd.f32 0.0, %v1958
        %v1960 = vpop.f32.mrb[0].mxu0
        %v1961 = vpop.f32.mrb[0].mxu0
        %v1962 = vadd.f32 0.0, %v1961
        %v1963 = vpop.f32.mrb[0].mxu0
        %1964 = vmatprep.mubr.bf16.mxu0 0
        %1965 = vmatmul.mubr.bf16.gmra.mrb[0].mxu0 %v1098
        %v1966 = vpop.f32.mrb[0].mxu0
        %v1967 = vadd.f32 0.0, %v1966
        %v1968 = vpop.f32.mrb[0].mxu0
        %v1969 = vpop.f32.mrb[0].mxu0
        %v1970 = vadd.f32 0.0, %v1969
        %v1971 = vpop.f32.mrb[0].mxu0
        %1972 = vmatprep.mubr.bf16.mxu0 0
        %1973 = vmatmul.mubr.bf16.gmra.mrb[0].mxu0 %v1099
        %v1974 = vpop.f32.mrb[0].mxu0
        %v1975 = vadd.f32 0.0, %v1974
        %v1976 = vpop.f32.mrb[0].mxu0
        %v1977 = vpop.f32.mrb[0].mxu0
        %v1978 = vadd.f32 0.0, %v1977
        %v1979 = vpop.f32.mrb[0].mxu0
        %1980 = vmatprep.mubr.bf16.mxu0 0
        %1981 = vmatmul.mubr.bf16.gmra.mrb[0].mxu0 %v1100
        %v1982 = vpop.f32.mrb[0].mxu0
        %v1983 = vadd.f32 0.0, %v1982
        %v1984 = vpop.f32.mrb[0].mxu0
        %v1985 = vpop.f32.mrb[0].mxu0
        %v1986 = vadd.f32 0.0, %v1985
        %v1987 = vpop.f32.mrb[0].mxu0
        %1988 = vmatprep.mubr.bf16.mxu0 0
        %1989 = vmatmul.mubr.bf16.gmra.mrb[0].mxu0 %v1101
        %v1990 = vpop.f32.mrb[0].mxu0
        %v1991 = vadd.f32 0.0, %v1990
        %v1992 = vpop.f32.mrb[0].mxu0
        %v1993 = vpop.f32.mrb[0].mxu0
        %v1994 = vadd.f32 0.0, %v1993
        %v1995 = vpop.f32.mrb[0].mxu0
        %1996 = vmatprep.mubr.bf16.mxu0 0
        %1997 = vmatmul.mubr.bf16.gmra.mrb[0].mxu0 %v1102
        %v1998 = vpop.f32.mrb[0].mxu0
        %v1999 = vadd.f32 0.0, %v1998
        %v2000 = vpop.f32.mrb[0].mxu0
        %v2001 = vpop.f32.mrb[0].mxu0
        %v2002 = vadd.f32 0.0, %v2001
        %v2003 = vpop.f32.mrb[0].mxu0
        %2004 = vmatprep.mubr.bf16.mxu0 0
        %2005 = vmatmul.mubr.bf16.gmra.mrb[0].mxu0 %v1103
        %v2006 = vpop.f32.mrb[0].mxu0
        %v2007 = vadd.f32 0.0, %v2006
        %v2008 = vpop.f32.mrb[0].mxu0
        %v2009 = vpop.f32.mrb[0].mxu0
        %v2010 = vadd.f32 0.0, %v2009
        %v2011 = vpop.f32.mrb[0].mxu0
        %2012 = vmatprep.mubr.bf16.mxu0 0
        %2013 = vmatmul.mubr.bf16.gmra.mrb[0].mxu0 %v1104
        %v2014 = vpop.f32.mrb[0].mxu0
        %v2015 = vadd.f32 0.0, %v2014
        %v2016 = vpop.f32.mrb[0].mxu0
        %v2017 = vpop.f32.mrb[0].mxu0
        %v2018 = vadd.f32 0.0, %v2017
        %v2019 = vpop.f32.mrb[0].mxu0
        %2020 = vmatprep.mubr.bf16.mxu0 0
        %2021 = vmatmul.mubr.bf16.gmra.mrb[0].mxu0 %v1105
        %v2022 = vpop.f32.mrb[0].mxu0
        %v2023 = vadd.f32 0.0, %v2022
        %v2024 = vpop.f32.mrb[0].mxu0
        %v2025 = vpop.f32.mrb[0].mxu0
        %v2026 = vadd.f32 0.0, %v2025
        %v2027 = vpop.f32.mrb[0].mxu0
        %2028 = vmatprep.mubr.bf16.mxu0 0
        %2029 = vmatmul.mubr.bf16.gmra.mrb[0].mxu0 %v1106
        %v2030 = vpop.f32.mrb[0].mxu0
        %v2031 = vadd.f32 0.0, %v2030
        %v2032 = vpop.f32.mrb[0].mxu0
        %v2033 = vpop.f32.mrb[0].mxu0
        %v2034 = vadd.f32 0.0, %v2033
        %v2035 = vpop.f32.mrb[0].mxu0
        %2036 = vmatprep.mubr.bf16.mxu0 0
        %2037 = vmatmul.mubr.bf16.gmra.mrb[0].mxu0 %v1107
        %v2038 = vpop.f32.mrb[0].mxu0
        %v2039 = vadd.f32 0.0, %v2038
        %v2040 = vpop.f32.mrb[0].mxu0
        %v2041 = vpop.f32.mrb[0].mxu0
        %v2042 = vadd.f32 0.0, %v2041
        %v2043 = vpop.f32.mrb[0].mxu0
        %2044 = vmatprep.mubr.bf16.mxu0 0
        %2045 = vmatmul.mubr.bf16.gmra.mrb[0].mxu0 %v1108
        %v2046 = vpop.f32.mrb[0].mxu0
        %v2047 = vadd.f32 0.0, %v2046
        %v2048 = vpop.f32.mrb[0].mxu0
        %v2049 = vpop.f32.mrb[0].mxu0
        %v2050 = vadd.f32 0.0, %v2049
        %v2051 = vpop.f32.mrb[0].mxu0
        %2052 = vmatprep.mubr.bf16.mxu0 0
        %2053 = vmatmul.mubr.bf16.gmra.mrb[0].mxu0 %v1851
        %v2054 = vpop.f32.mrb[0].mxu0
        %v2055 = vadd.f32 0.0, %v2054
        %v2056 = vpop.f32.mrb[0].mxu0
        %v2057 = vpop.f32.mrb[0].mxu0
        %v2058 = vadd.f32 0.0, %v2057
        %v2059 = vpop.f32.mrb[0].mxu0
        %2060 = vdwg.mxu0
        %v2061 = vadd.f32 %v1812, %v1935
        %v2062 = vadd.f32 %v1813, %v1938
        %v2063 = vadd.f32 %v1814, %v1943
        %v2064 = vadd.f32 %v1815, %v1946
        %v2065 = vadd.f32 %v1816, %v1951
        %v2066 = vadd.f32 %v1817, %v1954
        %v2067 = vadd.f32 %v1818, %v1959
        %v2068 = vadd.f32 %v1819, %v1962
        %v2069 = vadd.f32 %v1820, %v1967
        %v2070 = vadd.f32 %v1821, %v1970
        %v2071 = vadd.f32 %v1822, %v1975
        %v2072 = vadd.f32 %v1823, %v1978
        %v2073 = vadd.f32 %v1824, %v1983
        %v2074 = vadd.f32 %v1825, %v1986
        %v2075 = vadd.f32 %v1826, %v1991
        %v2076 = vadd.f32 %v1827, %v1994
        %v2077 = vadd.f32 %v1828, %v1999
        %v2078 = vadd.f32 %v1829, %v2002
        %v2079 = vadd.f32 %v1830, %v2007
        %v2080 = vadd.f32 %v1831, %v2010
        %v2081 = vadd.f32 %v1832, %v2015
        %v2082 = vadd.f32 %v1833, %v2018
        %v2083 = vadd.f32 %v1834, %v2023
        %v2084 = vadd.f32 %v1835, %v2026
        %v2085 = vadd.f32 %v1836, %v2031
        %v2086 = vadd.f32 %v1837, %v2034
        %v2087 = vadd.f32 %v1838, %v2039
        %v2088 = vadd.f32 %v1839, %v2042
        %v2089 = vadd.f32 %v1840, %v2047
        %v2090 = vadd.f32 %v1841, %v2050
        %v2091 = vadd.f32 %v1842, %v2055
        %v2092 = vadd.f32 %v1843, %v2058
        %v2093 = vpack.c.bf16 %v222, %v221
        %v2110 = vunpack.c.l.b16 %v320
        %v2111 = vunpack.c.l.b16 %v321
        %v2112 = vunpack.c.l.b16 %v322
        %v2113 = vunpack.c.l.b16 %v323
        %v2114 = vunpack.c.l.b16 %v324
        %v2115 = vunpack.c.l.b16 %v325
        %v2116 = vunpack.c.l.b16 %v326
        %v2117 = vunpack.c.l.b16 %v327
        %v2118 = vunpack.c.l.b16 %v328
        %v2119 = vunpack.c.l.b16 %v329
        %v2120 = vunpack.c.l.b16 %v330
        %v2121 = vunpack.c.l.b16 %v331
        %v2122 = vunpack.c.l.b16 %v332
        %v2123 = vunpack.c.l.b16 %v333
        %v2124 = vunpack.c.l.b16 %v334
        %v2125 = vunpack.c.l.b16 %v335
        %v2126 = vpack.c.b16 %v2111, %v2110
        %v2127 = vpack.c.b16 %v2113, %v2112
        %v2128 = vpack.c.b16 %v2115, %v2114
        %v2129 = vpack.c.b16 %v2117, %v2116
        %v2130 = vpack.c.b16 %v2119, %v2118
        %v2131 = vpack.c.b16 %v2121, %v2120
        %v2132 = vpack.c.b16 %v2123, %v2122
        %v2133 = vpack.c.b16 %v2125, %v2124
        %2142 = vmatprep.subr.bf16.mxu0 0
        %2143 = vmatpush1.bf16.msra.mxu0 %v2126
        %2144 = vmatprep.subr.bf16.mxu0 0
        %2145 = vmatpush1.bf16.msra.mxu0 %v2127
        %2146 = vmatprep.subr.bf16.mxu0 0
        %2147 = vmatpush1.bf16.msra.mxu0 %v2128
        %2148 = vmatprep.subr.bf16.mxu0 0
        %2149 = vmatpush1.bf16.msra.mxu0 %v2129
        %2150 = vmatprep.subr.bf16.mxu0 0
        %2151 = vmatpush1.bf16.msra.mxu0 %v2130
        %2152 = vmatprep.subr.bf16.mxu0 0
        %2153 = vmatpush1.bf16.msra.mxu0 %v2131
        %2154 = vmatprep.subr.bf16.mxu0 0
        %2155 = vmatpush1.bf16.msra.mxu0 %v2132
        %2156 = vmatprep.subr.bf16.mxu0 0
        %2157 = vmatpush1.bf16.msra.mxu0 %v2133
        %2158 = vmatprep.subr.bf16.mxu0 0
        %2159 = vmatpush1.bf16.msra.mxu0 0
        %2160 = vmatprep.subr.bf16.mxu0 0
        %2161 = vmatpush1.bf16.msra.mxu0 0
        %2162 = vmatprep.subr.bf16.mxu0 0
        %2163 = vmatpush1.bf16.msra.mxu0 0
        %2164 = vmatprep.subr.bf16.mxu0 0
        %2165 = vmatpush1.bf16.msra.mxu0 0
        %2166 = vmatprep.subr.bf16.mxu0 0
        %2167 = vmatpush1.bf16.msra.mxu0 0
        %2168 = vmatprep.subr.bf16.mxu0 0
        %2169 = vmatpush1.bf16.msra.mxu0 0
        %2170 = vmatprep.subr.bf16.mxu0 0
        %2171 = vmatpush1.bf16.msra.mxu0 0
        %2172 = vmatprep.subr.bf16.mxu0 0
        %2173 = vmatpush1.bf16.msra.mxu0 0
        %2174 = vmatprep.mubr.bf16.mxu0 0
        %2175 = vmatmul.mubr.bf16.gmra.mrb[0].mxu0 %v371
        %v2176 = vpop.f32.mrb[0].mxu0
        %v2177 = vadd.f32 0.0, %v2176
        %v2178 = vpop.f32.mrb[0].mxu0
        %v2179 = vpop.f32.mrb[0].mxu0
        %v2180 = vadd.f32 0.0, %v2179
        %v2181 = vpop.f32.mrb[0].mxu0
        %2182 = vmatprep.mubr.bf16.mxu0 0
        %2183 = vmatmul.mubr.bf16.gmra.mrb[0].mxu0 %v372
        %v2184 = vpop.f32.mrb[0].mxu0
        %v2185 = vadd.f32 0.0, %v2184
        %v2186 = vpop.f32.mrb[0].mxu0
        %v2187 = vpop.f32.mrb[0].mxu0
        %v2188 = vadd.f32 0.0, %v2187
        %v2189 = vpop.f32.mrb[0].mxu0
        %2190 = vmatprep.mubr.bf16.mxu0 0
        %2191 = vmatmul.mubr.bf16.gmra.mrb[0].mxu0 %v373
        %v2192 = vpop.f32.mrb[0].mxu0
        %v2193 = vadd.f32 0.0, %v2192
        %v2194 = vpop.f32.mrb[0].mxu0
        %v2195 = vpop.f32.mrb[0].mxu0
        %v2196 = vadd.f32 0.0, %v2195
        %v2197 = vpop.f32.mrb[0].mxu0
        %2198 = vmatprep.mubr.bf16.mxu0 0
        %2199 = vmatmul.mubr.bf16.gmra.mrb[0].mxu0 %v374
        %v2200 = vpop.f32.mrb[0].mxu0
        %v2201 = vadd.f32 0.0, %v2200
        %v2202 = vpop.f32.mrb[0].mxu0
        %v2203 = vpop.f32.mrb[0].mxu0
        %v2204 = vadd.f32 0.0, %v2203
        %v2205 = vpop.f32.mrb[0].mxu0
        %2206 = vmatprep.mubr.bf16.mxu0 0
        %2207 = vmatmul.mubr.bf16.gmra.mrb[0].mxu0 %v375
        %v2208 = vpop.f32.mrb[0].mxu0
        %v2209 = vadd.f32 0.0, %v2208
        %v2210 = vpop.f32.mrb[0].mxu0
        %v2211 = vpop.f32.mrb[0].mxu0
        %v2212 = vadd.f32 0.0, %v2211
        %v2213 = vpop.f32.mrb[0].mxu0
        %2214 = vmatprep.mubr.bf16.mxu0 0
        %2215 = vmatmul.mubr.bf16.gmra.mrb[0].mxu0 %v376
        %v2216 = vpop.f32.mrb[0].mxu0
        %v2217 = vadd.f32 0.0, %v2216
        %v2218 = vpop.f32.mrb[0].mxu0
        %v2219 = vpop.f32.mrb[0].mxu0
        %v2220 = vadd.f32 0.0, %v2219
        %v2221 = vpop.f32.mrb[0].mxu0
        %2222 = vmatprep.mubr.bf16.mxu0 0
        %2223 = vmatmul.mubr.bf16.gmra.mrb[0].mxu0 %v377
        %v2224 = vpop.f32.mrb[0].mxu0
        %v2225 = vadd.f32 0.0, %v2224
        %v2226 = vpop.f32.mrb[0].mxu0
        %v2227 = vpop.f32.mrb[0].mxu0
        %v2228 = vadd.f32 0.0, %v2227
        %v2229 = vpop.f32.mrb[0].mxu0
        %2230 = vmatprep.mubr.bf16.mxu0 0
        %2231 = vmatmul.mubr.bf16.gmra.mrb[0].mxu0 %v378
        %v2232 = vpop.f32.mrb[0].mxu0
        %v2233 = vadd.f32 0.0, %v2232
        %v2234 = vpop.f32.mrb[0].mxu0
        %v2235 = vpop.f32.mrb[0].mxu0
        %v2236 = vadd.f32 0.0, %v2235
        %v2237 = vpop.f32.mrb[0].mxu0
        %2238 = vmatprep.mubr.bf16.mxu0 0
        %2239 = vmatmul.mubr.bf16.gmra.mrb[0].mxu0 %v379
        %v2240 = vpop.f32.mrb[0].mxu0
        %v2241 = vadd.f32 0.0, %v2240
        %v2242 = vpop.f32.mrb[0].mxu0
        %v2243 = vpop.f32.mrb[0].mxu0
        %v2244 = vadd.f32 0.0, %v2243
        %v2245 = vpop.f32.mrb[0].mxu0
        %2246 = vmatprep.mubr.bf16.mxu0 0
        %2247 = vmatmul.mubr.bf16.gmra.mrb[0].mxu0 %v380
        %v2248 = vpop.f32.mrb[0].mxu0
        %v2249 = vadd.f32 0.0, %v2248
        %v2250 = vpop.f32.mrb[0].mxu0
        %v2251 = vpop.f32.mrb[0].mxu0
        %v2252 = vadd.f32 0.0, %v2251
        %v2253 = vpop.f32.mrb[0].mxu0
        %2254 = vmatprep.mubr.bf16.mxu0 0
        %2255 = vmatmul.mubr.bf16.gmra.mrb[0].mxu0 %v381
        %v2256 = vpop.f32.mrb[0].mxu0
        %v2257 = vadd.f32 0.0, %v2256
        %v2258 = vpop.f32.mrb[0].mxu0
        %v2259 = vpop.f32.mrb[0].mxu0
        %v2260 = vadd.f32 0.0, %v2259
        %v2261 = vpop.f32.mrb[0].mxu0
        %2262 = vmatprep.mubr.bf16.mxu0 0
        %2263 = vmatmul.mubr.bf16.gmra.mrb[0].mxu0 %v382
        %v2264 = vpop.f32.mrb[0].mxu0
        %v2265 = vadd.f32 0.0, %v2264
        %v2266 = vpop.f32.mrb[0].mxu0
        %v2267 = vpop.f32.mrb[0].mxu0
        %v2268 = vadd.f32 0.0, %v2267
        %v2269 = vpop.f32.mrb[0].mxu0
        %2270 = vmatprep.mubr.bf16.mxu0 0
        %2271 = vmatmul.mubr.bf16.gmra.mrb[0].mxu0 %v383
        %v2272 = vpop.f32.mrb[0].mxu0
        %v2273 = vadd.f32 0.0, %v2272
        %v2274 = vpop.f32.mrb[0].mxu0
        %v2275 = vpop.f32.mrb[0].mxu0
        %v2276 = vadd.f32 0.0, %v2275
        %v2277 = vpop.f32.mrb[0].mxu0
        %2278 = vmatprep.mubr.bf16.mxu0 0
        %2279 = vmatmul.mubr.bf16.gmra.mrb[0].mxu0 %v384
        %v2280 = vpop.f32.mrb[0].mxu0
        %v2281 = vadd.f32 0.0, %v2280
        %v2282 = vpop.f32.mrb[0].mxu0
        %v2283 = vpop.f32.mrb[0].mxu0
        %v2284 = vadd.f32 0.0, %v2283
        %v2285 = vpop.f32.mrb[0].mxu0
        %2286 = vmatprep.mubr.bf16.mxu0 0
        %2287 = vmatmul.mubr.bf16.gmra.mrb[0].mxu0 %v1350
        %v2288 = vpop.f32.mrb[0].mxu0
        %v2289 = vadd.f32 0.0, %v2288
        %v2290 = vpop.f32.mrb[0].mxu0
        %v2291 = vpop.f32.mrb[0].mxu0
        %v2292 = vadd.f32 0.0, %v2291
        %v2293 = vpop.f32.mrb[0].mxu0
        %2294 = vmatprep.mubr.bf16.mxu0 0
        %2295 = vmatmul.mubr.bf16.gmra.mrb[0].mxu0 %v2093
        %v2296 = vpop.f32.mrb[0].mxu0
        %v2297 = vadd.f32 0.0, %v2296
        %v2298 = vpop.f32.mrb[0].mxu0
        %v2299 = vpop.f32.mrb[0].mxu0
        %v2300 = vadd.f32 0.0, %v2299
        %v2301 = vpop.f32.mrb[0].mxu0
        %2302 = vdwg.mxu0
        %v2303 = vadd.f32 %v2061, %v2177
        %v2304 = vadd.f32 %v2062, %v2180
        %v2305 = vadd.f32 %v2063, %v2185
        %v2306 = vadd.f32 %v2064, %v2188
        %v2307 = vadd.f32 %v2065, %v2193
        %v2308 = vadd.f32 %v2066, %v2196
        %v2309 = vadd.f32 %v2067, %v2201
        %v2310 = vadd.f32 %v2068, %v2204
        %v2311 = vadd.f32 %v2069, %v2209
        %v2312 = vadd.f32 %v2070, %v2212
        %v2313 = vadd.f32 %v2071, %v2217
        %v2314 = vadd.f32 %v2072, %v2220
        %v2315 = vadd.f32 %v2073, %v2225
        %v2316 = vadd.f32 %v2074, %v2228
        %v2317 = vadd.f32 %v2075, %v2233
        %v2318 = vadd.f32 %v2076, %v2236
        %v2319 = vadd.f32 %v2077, %v2241
        %v2320 = vadd.f32 %v2078, %v2244
        %v2321 = vadd.f32 %v2079, %v2249
        %v2322 = vadd.f32 %v2080, %v2252
        %v2323 = vadd.f32 %v2081, %v2257
        %v2324 = vadd.f32 %v2082, %v2260
        %v2325 = vadd.f32 %v2083, %v2265
        %v2326 = vadd.f32 %v2084, %v2268
        %v2327 = vadd.f32 %v2085, %v2273
        %v2328 = vadd.f32 %v2086, %v2276
        %v2329 = vadd.f32 %v2087, %v2281
        %v2330 = vadd.f32 %v2088, %v2284
        %v2331 = vadd.f32 %v2089, %v2289
        %v2332 = vadd.f32 %v2090, %v2292
        %v2333 = vadd.f32 %v2091, %v2297
        %v2334 = vadd.f32 %v2092, %v2300
        %v2338 = vrot.slane %v221, 1
        %v2339 = vrot.slane %v222, 1
        %v2340 = vsel %vm433, %v2338, %v2339
        %v2341 = vrot.slane %v223, 1
        %v2342 = vsel %vm433, %v2339, %v2341
        %v2345 = vpack.c.bf16 %v2342, %v2340
        %v2362 = vunpack.c.l.b16 %v336
        %v2363 = vunpack.c.l.b16 %v337
        %v2364 = vunpack.c.l.b16 %v338
        %v2365 = vunpack.c.l.b16 %v339
        %v2366 = vunpack.c.l.b16 %v340
        %v2367 = vunpack.c.l.b16 %v341
        %v2368 = vunpack.c.l.b16 %v342
        %v2369 = vunpack.c.l.b16 %v343
        %v2370 = vunpack.c.l.b16 %v344
        %v2371 = vunpack.c.l.b16 %v345
        %v2372 = vunpack.c.l.b16 %v346
        %v2373 = vunpack.c.l.b16 %v347
        %v2374 = vunpack.c.l.b16 %v348
        %v2375 = vunpack.c.l.b16 %v349
        %v2376 = vunpack.c.l.b16 %v350
        %v2377 = vunpack.c.l.b16 %v351
        %v2378 = vpack.c.b16 %v2363, %v2362
        %v2379 = vpack.c.b16 %v2365, %v2364
        %v2380 = vpack.c.b16 %v2367, %v2366
        %v2381 = vpack.c.b16 %v2369, %v2368
        %v2382 = vpack.c.b16 %v2371, %v2370
        %v2383 = vpack.c.b16 %v2373, %v2372
        %v2384 = vpack.c.b16 %v2375, %v2374
        %v2385 = vpack.c.b16 %v2377, %v2376
        %2394 = vmatprep.subr.bf16.mxu0 0
        %2395 = vmatpush1.bf16.msra.mxu0 %v2378
        %2396 = vmatprep.subr.bf16.mxu0 0
        %2397 = vmatpush1.bf16.msra.mxu0 %v2379
        %2398 = vmatprep.subr.bf16.mxu0 0
        %2399 = vmatpush1.bf16.msra.mxu0 %v2380
        %2400 = vmatprep.subr.bf16.mxu0 0
        %2401 = vmatpush1.bf16.msra.mxu0 %v2381
        %2402 = vmatprep.subr.bf16.mxu0 0
        %2403 = vmatpush1.bf16.msra.mxu0 %v2382
        %2404 = vmatprep.subr.bf16.mxu0 0
        %2405 = vmatpush1.bf16.msra.mxu0 %v2383
        %2406 = vmatprep.subr.bf16.mxu0 0
        %2407 = vmatpush1.bf16.msra.mxu0 %v2384
        %2408 = vmatprep.subr.bf16.mxu0 0
        %2409 = vmatpush1.bf16.msra.mxu0 %v2385
        %2410 = vmatprep.subr.bf16.mxu0 0
        %2411 = vmatpush1.bf16.msra.mxu0 0
        %2412 = vmatprep.subr.bf16.mxu0 0
        %2413 = vmatpush1.bf16.msra.mxu0 0
        %2414 = vmatprep.subr.bf16.mxu0 0
        %2415 = vmatpush1.bf16.msra.mxu0 0
        %2416 = vmatprep.subr.bf16.mxu0 0
        %2417 = vmatpush1.bf16.msra.mxu0 0
        %2418 = vmatprep.subr.bf16.mxu0 0
        %2419 = vmatpush1.bf16.msra.mxu0 0
        %2420 = vmatprep.subr.bf16.mxu0 0
        %2421 = vmatpush1.bf16.msra.mxu0 0
        %2422 = vmatprep.subr.bf16.mxu0 0
        %2423 = vmatpush1.bf16.msra.mxu0 0
        %2424 = vmatprep.subr.bf16.mxu0 0
        %2425 = vmatpush1.bf16.msra.mxu0 0
        %2426 = vmatprep.mubr.bf16.mxu0 0
        %2427 = vmatmul.mubr.bf16.gmra.mrb[0].mxu0 %v548
        %v2428 = vpop.f32.mrb[0].mxu0
        %v2429 = vadd.f32 0.0, %v2428
        %v2430 = vpop.f32.mrb[0].mxu0
        %v2431 = vpop.f32.mrb[0].mxu0
        %v2432 = vadd.f32 0.0, %v2431
        %v2433 = vpop.f32.mrb[0].mxu0
        %2434 = vmatprep.mubr.bf16.mxu0 0
        %2435 = vmatmul.mubr.bf16.gmra.mrb[0].mxu0 %v549
        %v2436 = vpop.f32.mrb[0].mxu0
        %v2437 = vadd.f32 0.0, %v2436
        %v2438 = vpop.f32.mrb[0].mxu0
        %v2439 = vpop.f32.mrb[0].mxu0
        %v2440 = vadd.f32 0.0, %v2439
        %v2441 = vpop.f32.mrb[0].mxu0
        %2442 = vmatprep.mubr.bf16.mxu0 0
        %2443 = vmatmul.mubr.bf16.gmra.mrb[0].mxu0 %v550
        %v2444 = vpop.f32.mrb[0].mxu0
        %v2445 = vadd.f32 0.0, %v2444
        %v2446 = vpop.f32.mrb[0].mxu0
        %v2447 = vpop.f32.mrb[0].mxu0
        %v2448 = vadd.f32 0.0, %v2447
        %v2449 = vpop.f32.mrb[0].mxu0
        %2450 = vmatprep.mubr.bf16.mxu0 0
        %2451 = vmatmul.mubr.bf16.gmra.mrb[0].mxu0 %v551
        %v2452 = vpop.f32.mrb[0].mxu0
        %v2453 = vadd.f32 0.0, %v2452
        %v2454 = vpop.f32.mrb[0].mxu0
        %v2455 = vpop.f32.mrb[0].mxu0
        %v2456 = vadd.f32 0.0, %v2455
        %v2457 = vpop.f32.mrb[0].mxu0
        %2458 = vmatprep.mubr.bf16.mxu0 0
        %2459 = vmatmul.mubr.bf16.gmra.mrb[0].mxu0 %v552
        %v2460 = vpop.f32.mrb[0].mxu0
        %v2461 = vadd.f32 0.0, %v2460
        %v2462 = vpop.f32.mrb[0].mxu0
        %v2463 = vpop.f32.mrb[0].mxu0
        %v2464 = vadd.f32 0.0, %v2463
        %v2465 = vpop.f32.mrb[0].mxu0
        %2466 = vmatprep.mubr.bf16.mxu0 0
        %2467 = vmatmul.mubr.bf16.gmra.mrb[0].mxu0 %v553
        %v2468 = vpop.f32.mrb[0].mxu0
        %v2469 = vadd.f32 0.0, %v2468
        %v2470 = vpop.f32.mrb[0].mxu0
        %v2471 = vpop.f32.mrb[0].mxu0
        %v2472 = vadd.f32 0.0, %v2471
        %v2473 = vpop.f32.mrb[0].mxu0
        %2474 = vmatprep.mubr.bf16.mxu0 0
        %2475 = vmatmul.mubr.bf16.gmra.mrb[0].mxu0 %v554
        %v2476 = vpop.f32.mrb[0].mxu0
        %v2477 = vadd.f32 0.0, %v2476
        %v2478 = vpop.f32.mrb[0].mxu0
        %v2479 = vpop.f32.mrb[0].mxu0
        %v2480 = vadd.f32 0.0, %v2479
        %v2481 = vpop.f32.mrb[0].mxu0
        %2482 = vmatprep.mubr.bf16.mxu0 0
        %2483 = vmatmul.mubr.bf16.gmra.mrb[0].mxu0 %v555
        %v2484 = vpop.f32.mrb[0].mxu0
        %v2485 = vadd.f32 0.0, %v2484
        %v2486 = vpop.f32.mrb[0].mxu0
        %v2487 = vpop.f32.mrb[0].mxu0
        %v2488 = vadd.f32 0.0, %v2487
        %v2489 = vpop.f32.mrb[0].mxu0
        %2490 = vmatprep.mubr.bf16.mxu0 0
        %2491 = vmatmul.mubr.bf16.gmra.mrb[0].mxu0 %v556
        %v2492 = vpop.f32.mrb[0].mxu0
        %v2493 = vadd.f32 0.0, %v2492
        %v2494 = vpop.f32.mrb[0].mxu0
        %v2495 = vpop.f32.mrb[0].mxu0
        %v2496 = vadd.f32 0.0, %v2495
        %v2497 = vpop.f32.mrb[0].mxu0
        %2498 = vmatprep.mubr.bf16.mxu0 0
        %2499 = vmatmul.mubr.bf16.gmra.mrb[0].mxu0 %v557
        %v2500 = vpop.f32.mrb[0].mxu0
        %v2501 = vadd.f32 0.0, %v2500
        %v2502 = vpop.f32.mrb[0].mxu0
        %v2503 = vpop.f32.mrb[0].mxu0
        %v2504 = vadd.f32 0.0, %v2503
        %v2505 = vpop.f32.mrb[0].mxu0
        %2506 = vmatprep.mubr.bf16.mxu0 0
        %2507 = vmatmul.mubr.bf16.gmra.mrb[0].mxu0 %v558
        %v2508 = vpop.f32.mrb[0].mxu0
        %v2509 = vadd.f32 0.0, %v2508
        %v2510 = vpop.f32.mrb[0].mxu0
        %v2511 = vpop.f32.mrb[0].mxu0
        %v2512 = vadd.f32 0.0, %v2511
        %v2513 = vpop.f32.mrb[0].mxu0
        %2514 = vmatprep.mubr.bf16.mxu0 0
        %2515 = vmatmul.mubr.bf16.gmra.mrb[0].mxu0 %v559
        %v2516 = vpop.f32.mrb[0].mxu0
        %v2517 = vadd.f32 0.0, %v2516
        %v2518 = vpop.f32.mrb[0].mxu0
        %v2519 = vpop.f32.mrb[0].mxu0
        %v2520 = vadd.f32 0.0, %v2519
        %v2521 = vpop.f32.mrb[0].mxu0
        %2522 = vmatprep.mubr.bf16.mxu0 0
        %2523 = vmatmul.mubr.bf16.gmra.mrb[0].mxu0 %v560
        %v2524 = vpop.f32.mrb[0].mxu0
        %v2525 = vadd.f32 0.0, %v2524
        %v2526 = vpop.f32.mrb[0].mxu0
        %v2527 = vpop.f32.mrb[0].mxu0
        %v2528 = vadd.f32 0.0, %v2527
        %v2529 = vpop.f32.mrb[0].mxu0
        %2530 = vmatprep.mubr.bf16.mxu0 0
        %2531 = vmatmul.mubr.bf16.gmra.mrb[0].mxu0 %v561
        %v2532 = vpop.f32.mrb[0].mxu0
        %v2533 = vadd.f32 0.0, %v2532
        %v2534 = vpop.f32.mrb[0].mxu0
        %v2535 = vpop.f32.mrb[0].mxu0
        %v2536 = vadd.f32 0.0, %v2535
        %v2537 = vpop.f32.mrb[0].mxu0
        %2538 = vmatprep.mubr.bf16.mxu0 0
        %2539 = vmatmul.mubr.bf16.gmra.mrb[0].mxu0 %v1602
        %v2540 = vpop.f32.mrb[0].mxu0
        %v2541 = vadd.f32 0.0, %v2540
        %v2542 = vpop.f32.mrb[0].mxu0
        %v2543 = vpop.f32.mrb[0].mxu0
        %v2544 = vadd.f32 0.0, %v2543
        %v2545 = vpop.f32.mrb[0].mxu0
        %2546 = vmatprep.mubr.bf16.mxu0 0
        %2547 = vmatmul.mubr.bf16.gmra.mrb[0].mxu0 %v2345
        %v2548 = vpop.f32.mrb[0].mxu0
        %v2549 = vadd.f32 0.0, %v2548
        %v2550 = vpop.f32.mrb[0].mxu0
        %v2551 = vpop.f32.mrb[0].mxu0
        %v2552 = vadd.f32 0.0, %v2551
        %v2553 = vpop.f32.mrb[0].mxu0
        %2554 = vdwg.mxu0
        %v2555 = vadd.f32 %v2303, %v2429
        %v2556 = vadd.f32 %v2304, %v2432
        %v2557 = vadd.f32 %v2305, %v2437
        %v2558 = vadd.f32 %v2306, %v2440
        %v2559 = vadd.f32 %v2307, %v2445
        %v2560 = vadd.f32 %v2308, %v2448
        %v2561 = vadd.f32 %v2309, %v2453
        %v2562 = vadd.f32 %v2310, %v2456
        %v2563 = vadd.f32 %v2311, %v2461
        %v2564 = vadd.f32 %v2312, %v2464
        %v2565 = vadd.f32 %v2313, %v2469
        %v2566 = vadd.f32 %v2314, %v2472
        %v2567 = vadd.f32 %v2315, %v2477
        %v2568 = vadd.f32 %v2316, %v2480
        %v2569 = vadd.f32 %v2317, %v2485
        %v2570 = vadd.f32 %v2318, %v2488
        %v2571 = vadd.f32 %v2319, %v2493
        %v2572 = vadd.f32 %v2320, %v2496
        %v2573 = vadd.f32 %v2321, %v2501
        %v2574 = vadd.f32 %v2322, %v2504
        %v2575 = vadd.f32 %v2323, %v2509
        %v2576 = vadd.f32 %v2324, %v2512
        %v2577 = vadd.f32 %v2325, %v2517
        %v2578 = vadd.f32 %v2326, %v2520
        %v2579 = vadd.f32 %v2327, %v2525
        %v2580 = vadd.f32 %v2328, %v2528
        %v2581 = vadd.f32 %v2329, %v2533
        %v2582 = vadd.f32 %v2330, %v2536
        %v2583 = vadd.f32 %v2331, %v2541
        %v2584 = vadd.f32 %v2332, %v2544
        %v2585 = vadd.f32 %v2333, %v2549
        %v2586 = vadd.f32 %v2334, %v2552
        %v2587 = vrot.slane %v221, 2
        %v2588 = vrot.slane %v222, 2
        %v2589 = vsel %vm980, %v2587, %v2588
        %v2590 = vrot.slane %v223, 2
        %v2591 = vsel %vm980, %v2588, %v2590
        %v2594 = vpack.c.bf16 %v2591, %v2589
        %v2611 = vunpack.c.l.b16 %v352
        %v2612 = vunpack.c.l.b16 %v353
        %v2613 = vunpack.c.l.b16 %v354
        %v2614 = vunpack.c.l.b16 %v355
        %v2615 = vunpack.c.l.b16 %v356
        %v2616 = vunpack.c.l.b16 %v357
        %v2617 = vunpack.c.l.b16 %v358
        %v2618 = vunpack.c.l.b16 %v359
        %v2619 = vunpack.c.l.b16 %v360
        %v2620 = vunpack.c.l.b16 %v361
        %v2621 = vunpack.c.l.b16 %v362
        %v2622 = vunpack.c.l.b16 %v363
        %v2623 = vunpack.c.l.b16 %v364
        %v2624 = vunpack.c.l.b16 %v365
        %v2625 = vunpack.c.l.b16 %v366
        %v2626 = vunpack.c.l.b16 %v367
        %v2627 = vpack.c.b16 %v2612, %v2611
        %v2628 = vpack.c.b16 %v2614, %v2613
        %v2629 = vpack.c.b16 %v2616, %v2615
        %v2630 = vpack.c.b16 %v2618, %v2617
        %v2631 = vpack.c.b16 %v2620, %v2619
        %v2632 = vpack.c.b16 %v2622, %v2621
        %v2633 = vpack.c.b16 %v2624, %v2623
        %v2634 = vpack.c.b16 %v2626, %v2625
        %2643 = vmatprep.subr.bf16.mxu0 0
        %2644 = vmatpush1.bf16.msra.mxu0 %v2627
        %2645 = vmatprep.subr.bf16.mxu0 0
        %2646 = vmatpush1.bf16.msra.mxu0 %v2628
        %2647 = vmatprep.subr.bf16.mxu0 0
        %2648 = vmatpush1.bf16.msra.mxu0 %v2629
        %2649 = vmatprep.subr.bf16.mxu0 0
        %2650 = vmatpush1.bf16.msra.mxu0 %v2630
        %2651 = vmatprep.subr.bf16.mxu0 0
        %2652 = vmatpush1.bf16.msra.mxu0 %v2631
        %2653 = vmatprep.subr.bf16.mxu0 0
        %2654 = vmatpush1.bf16.msra.mxu0 %v2632
        %2655 = vmatprep.subr.bf16.mxu0 0
        %2656 = vmatpush1.bf16.msra.mxu0 %v2633
        %2657 = vmatprep.subr.bf16.mxu0 0
        %2658 = vmatpush1.bf16.msra.mxu0 %v2634
        %2659 = vmatprep.subr.bf16.mxu0 0
        %2660 = vmatpush1.bf16.msra.mxu0 0
        %2661 = vmatprep.subr.bf16.mxu0 0
        %2662 = vmatpush1.bf16.msra.mxu0 0
        %2663 = vmatprep.subr.bf16.mxu0 0
        %2664 = vmatpush1.bf16.msra.mxu0 0
        %2665 = vmatprep.subr.bf16.mxu0 0
        %2666 = vmatpush1.bf16.msra.mxu0 0
        %2667 = vmatprep.subr.bf16.mxu0 0
        %2668 = vmatpush1.bf16.msra.mxu0 0
        %2669 = vmatprep.subr.bf16.mxu0 0
        %2670 = vmatpush1.bf16.msra.mxu0 0
        %2671 = vmatprep.subr.bf16.mxu0 0
        %2672 = vmatpush1.bf16.msra.mxu0 0
        %2673 = vmatprep.subr.bf16.mxu0 0
        %2674 = vmatpush1.bf16.msra.mxu0 0
        %2675 = vmatprep.mubr.bf16.mxu0 0
        %2676 = vmatmul.mubr.bf16.gmra.mrb[0].mxu0 %v1095
        %v2677 = vpop.f32.mrb[0].mxu0
        %v2678 = vadd.f32 0.0, %v2677
        %v2679 = vpop.f32.mrb[0].mxu0
        %v2680 = vpop.f32.mrb[0].mxu0
        %v2681 = vadd.f32 0.0, %v2680
        %v2682 = vpop.f32.mrb[0].mxu0
        %2683 = vmatprep.mubr.bf16.mxu0 0
        %2684 = vmatmul.mubr.bf16.gmra.mrb[0].mxu0 %v1096
        %v2685 = vpop.f32.mrb[0].mxu0
        %v2686 = vadd.f32 0.0, %v2685
        %v2687 = vpop.f32.mrb[0].mxu0
        %v2688 = vpop.f32.mrb[0].mxu0
        %v2689 = vadd.f32 0.0, %v2688
        %v2690 = vpop.f32.mrb[0].mxu0
        %2691 = vmatprep.mubr.bf16.mxu0 0
        %2692 = vmatmul.mubr.bf16.gmra.mrb[0].mxu0 %v1097
        %v2693 = vpop.f32.mrb[0].mxu0
        %v2694 = vadd.f32 0.0, %v2693
        %v2695 = vpop.f32.mrb[0].mxu0
        %v2696 = vpop.f32.mrb[0].mxu0
        %v2697 = vadd.f32 0.0, %v2696
        %v2698 = vpop.f32.mrb[0].mxu0
        %2699 = vmatprep.mubr.bf16.mxu0 0
        %2700 = vmatmul.mubr.bf16.gmra.mrb[0].mxu0 %v1098
        %v2701 = vpop.f32.mrb[0].mxu0
        %v2702 = vadd.f32 0.0, %v2701
        %v2703 = vpop.f32.mrb[0].mxu0
        %v2704 = vpop.f32.mrb[0].mxu0
        %v2705 = vadd.f32 0.0, %v2704
        %v2706 = vpop.f32.mrb[0].mxu0
        %2707 = vmatprep.mubr.bf16.mxu0 0
        %2708 = vmatmul.mubr.bf16.gmra.mrb[0].mxu0 %v1099
        %v2709 = vpop.f32.mrb[0].mxu0
        %v2710 = vadd.f32 0.0, %v2709
        %v2711 = vpop.f32.mrb[0].mxu0
        %v2712 = vpop.f32.mrb[0].mxu0
        %v2713 = vadd.f32 0.0, %v2712
        %v2714 = vpop.f32.mrb[0].mxu0
        %2715 = vmatprep.mubr.bf16.mxu0 0
        %2716 = vmatmul.mubr.bf16.gmra.mrb[0].mxu0 %v1100
        %v2717 = vpop.f32.mrb[0].mxu0
        %v2718 = vadd.f32 0.0, %v2717
        %v2719 = vpop.f32.mrb[0].mxu0
        %v2720 = vpop.f32.mrb[0].mxu0
        %v2721 = vadd.f32 0.0, %v2720
        %v2722 = vpop.f32.mrb[0].mxu0
        %2723 = vmatprep.mubr.bf16.mxu0 0
        %2724 = vmatmul.mubr.bf16.gmra.mrb[0].mxu0 %v1101
        %v2725 = vpop.f32.mrb[0].mxu0
        %v2726 = vadd.f32 0.0, %v2725
        %v2727 = vpop.f32.mrb[0].mxu0
        %v2728 = vpop.f32.mrb[0].mxu0
        %v2729 = vadd.f32 0.0, %v2728
        %v2730 = vpop.f32.mrb[0].mxu0
        %2731 = vmatprep.mubr.bf16.mxu0 0
        %2732 = vmatmul.mubr.bf16.gmra.mrb[0].mxu0 %v1102
        %v2733 = vpop.f32.mrb[0].mxu0
        %v2734 = vadd.f32 0.0, %v2733
        %v2735 = vpop.f32.mrb[0].mxu0
        %v2736 = vpop.f32.mrb[0].mxu0
        %v2737 = vadd.f32 0.0, %v2736
        %v2738 = vpop.f32.mrb[0].mxu0
        %2739 = vmatprep.mubr.bf16.mxu0 0
        %2740 = vmatmul.mubr.bf16.gmra.mrb[0].mxu0 %v1103
        %v2741 = vpop.f32.mrb[0].mxu0
        %v2742 = vadd.f32 0.0, %v2741
        %v2743 = vpop.f32.mrb[0].mxu0
        %v2744 = vpop.f32.mrb[0].mxu0
        %v2745 = vadd.f32 0.0, %v2744
        %v2746 = vpop.f32.mrb[0].mxu0
        %2747 = vmatprep.mubr.bf16.mxu0 0
        %2748 = vmatmul.mubr.bf16.gmra.mrb[0].mxu0 %v1104
        %v2749 = vpop.f32.mrb[0].mxu0
        %v2750 = vadd.f32 0.0, %v2749
        %v2751 = vpop.f32.mrb[0].mxu0
        %v2752 = vpop.f32.mrb[0].mxu0
        %v2753 = vadd.f32 0.0, %v2752
        %v2754 = vpop.f32.mrb[0].mxu0
        %2755 = vmatprep.mubr.bf16.mxu0 0
        %2756 = vmatmul.mubr.bf16.gmra.mrb[0].mxu0 %v1105
        %v2757 = vpop.f32.mrb[0].mxu0
        %v2758 = vadd.f32 0.0, %v2757
        %v2759 = vpop.f32.mrb[0].mxu0
        %v2760 = vpop.f32.mrb[0].mxu0
        %v2761 = vadd.f32 0.0, %v2760
        %v2762 = vpop.f32.mrb[0].mxu0
        %2763 = vmatprep.mubr.bf16.mxu0 0
        %2764 = vmatmul.mubr.bf16.gmra.mrb[0].mxu0 %v1106
        %v2765 = vpop.f32.mrb[0].mxu0
        %v2766 = vadd.f32 0.0, %v2765
        %v2767 = vpop.f32.mrb[0].mxu0
        %v2768 = vpop.f32.mrb[0].mxu0
        %v2769 = vadd.f32 0.0, %v2768
        %v2770 = vpop.f32.mrb[0].mxu0
        %2771 = vmatprep.mubr.bf16.mxu0 0
        %2772 = vmatmul.mubr.bf16.gmra.mrb[0].mxu0 %v1107
        %v2773 = vpop.f32.mrb[0].mxu0
        %v2774 = vadd.f32 0.0, %v2773
        %v2775 = vpop.f32.mrb[0].mxu0
        %v2776 = vpop.f32.mrb[0].mxu0
        %v2777 = vadd.f32 0.0, %v2776
        %v2778 = vpop.f32.mrb[0].mxu0
        %2779 = vmatprep.mubr.bf16.mxu0 0
        %2780 = vmatmul.mubr.bf16.gmra.mrb[0].mxu0 %v1108
        %v2781 = vpop.f32.mrb[0].mxu0
        %v2782 = vadd.f32 0.0, %v2781
        %v2783 = vpop.f32.mrb[0].mxu0
        %v2784 = vpop.f32.mrb[0].mxu0
        %v2785 = vadd.f32 0.0, %v2784
        %v2786 = vpop.f32.mrb[0].mxu0
        %2787 = vmatprep.mubr.bf16.mxu0 0
        %2788 = vmatmul.mubr.bf16.gmra.mrb[0].mxu0 %v1851
        %v2789 = vpop.f32.mrb[0].mxu0
        %v2790 = vadd.f32 0.0, %v2789
        %v2791 = vpop.f32.mrb[0].mxu0
        %v2792 = vpop.f32.mrb[0].mxu0
        %v2793 = vadd.f32 0.0, %v2792
        %v2794 = vpop.f32.mrb[0].mxu0
        %2795 = vmatprep.mubr.bf16.mxu0 0
        %2796 = vmatmul.mubr.bf16.gmra.mrb[0].mxu0 %v2594
        %v2797 = vpop.f32.mrb[0].mxu0
        %v2798 = vadd.f32 0.0, %v2797
        %v2799 = vpop.f32.mrb[0].mxu0
        %v2800 = vpop.f32.mrb[0].mxu0
        %v2801 = vadd.f32 0.0, %v2800
        %v2802 = vpop.f32.mrb[0].mxu0
        %2803 = vdwg.mxu0
        %v2804 = vadd.f32 %v2555, %v2678
        %v2805 = vadd.f32 %v2556, %v2681
        %v2806 = vadd.f32 %v2557, %v2686
        %v2807 = vadd.f32 %v2558, %v2689
        %v2808 = vadd.f32 %v2559, %v2694
        %v2809 = vadd.f32 %v2560, %v2697
        %v2810 = vadd.f32 %v2561, %v2702
        %v2811 = vadd.f32 %v2562, %v2705
        %v2812 = vadd.f32 %v2563, %v2710
        %v2813 = vadd.f32 %v2564, %v2713
        %v2814 = vadd.f32 %v2565, %v2718
        %v2815 = vadd.f32 %v2566, %v2721
        %v2816 = vadd.f32 %v2567, %v2726
        %v2817 = vadd.f32 %v2568, %v2729
        %v2818 = vadd.f32 %v2569, %v2734
        %v2819 = vadd.f32 %v2570, %v2737
        %v2820 = vadd.f32 %v2571, %v2742
        %v2821 = vadd.f32 %v2572, %v2745
        %v2822 = vadd.f32 %v2573, %v2750
        %v2823 = vadd.f32 %v2574, %v2753
        %v2824 = vadd.f32 %v2575, %v2758
        %v2825 = vadd.f32 %v2576, %v2761
        %v2826 = vadd.f32 %v2577, %v2766
        %v2827 = vadd.f32 %v2578, %v2769
        %v2828 = vadd.f32 %v2579, %v2774
        %v2829 = vadd.f32 %v2580, %v2777
        %v2830 = vadd.f32 %v2581, %v2782
        %v2831 = vadd.f32 %v2582, %v2785
        %v2832 = vadd.f32 %v2583, %v2790
        %v2833 = vadd.f32 %v2584, %v2793
        %v2834 = vadd.f32 %v2585, %v2798
        %v2835 = vadd.f32 %v2586, %v2801
        %v2837 = vlaneseq
        %v2838 = vshrl.u32 %v2837, 7
        %v2839 = vsub.s32 0, %v2838
        %v2840 = vrot.slane %v368, %v2839
        %v2842 = vadd.f32 %v2804, %v2840
        %v2843 = vadd.f32 %v2805, %v2840
        %v2844 = vadd.f32 %v2806, %v2840
        %v2845 = vadd.f32 %v2807, %v2840
        %v2846 = vadd.f32 %v2808, %v2840
        %v2847 = vadd.f32 %v2809, %v2840
        %v2848 = vadd.f32 %v2810, %v2840
        %v2849 = vadd.f32 %v2811, %v2840
        %v2850 = vadd.f32 %v2812, %v2840
        %v2851 = vadd.f32 %v2813, %v2840
        %v2852 = vadd.f32 %v2814, %v2840
        %v2853 = vadd.f32 %v2815, %v2840
        %v2854 = vadd.f32 %v2816, %v2840
        %v2855 = vadd.f32 %v2817, %v2840
        %v2856 = vadd.f32 %v2818, %v2840
        %v2857 = vadd.f32 %v2819, %v2840
        %v2858 = vadd.f32 %v2820, %v2840
        %v2859 = vadd.f32 %v2821, %v2840
        %v2860 = vadd.f32 %v2822, %v2840
        %v2861 = vadd.f32 %v2823, %v2840
        %v2862 = vadd.f32 %v2824, %v2840
        %v2863 = vadd.f32 %v2825, %v2840
        %v2864 = vadd.f32 %v2826, %v2840
        %v2865 = vadd.f32 %v2827, %v2840
        %v2866 = vadd.f32 %v2828, %v2840
        %v2867 = vadd.f32 %v2829, %v2840
        %v2868 = vadd.f32 %v2830, %v2840
        %v2869 = vadd.f32 %v2831, %v2840
        %v2870 = vadd.f32 %v2832, %v2840
        %v2871 = vadd.f32 %v2833, %v2840
        %v2872 = vadd.f32 %v2834, %v2840
        %v2873 = vadd.f32 %v2835, %v2840
        %2874 = vst [vmem:[%s163] sm:$0xff] %v2842
        %2875 = vst [vmem:[%s163 + $0x8] sm:$0xff] %v2843
        %2876 = vst [vmem:[%s163 + $0x10] sm:$0xff] %v2844
        %2877 = vst [vmem:[%s163 + $0x18] sm:$0xff] %v2845
        %2878 = vst [vmem:[%s163 + $0x20] sm:$0xff] %v2846
        %2879 = vst [vmem:[%s163 + $0x28] sm:$0xff] %v2847
        %2880 = vst [vmem:[%s163 + $0x30] sm:$0xff] %v2848
        %2881 = vst [vmem:[%s163 + $0x38] sm:$0xff] %v2849
        %2882 = vst [vmem:[%s163 + $0x40] sm:$0xff] %v2850
        %2883 = vst [vmem:[%s163 + $0x48] sm:$0xff] %v2851
        %2884 = vst [vmem:[%s163 + $0x50] sm:$0xff] %v2852
        %2885 = vst [vmem:[%s163 + $0x58] sm:$0xff] %v2853
        %2886 = vst [vmem:[%s163 + $0x60] sm:$0xff] %v2854
        %2887 = vst [vmem:[%s163 + $0x68] sm:$0xff] %v2855
        %2888 = vst [vmem:[%s163 + $0x70] sm:$0xff] %v2856
        %2889 = vst [vmem:[%s163 + $0x78] sm:$0xff] %v2857
        %2890 = vst [vmem:[%s163 + $0x80] sm:$0xff] %v2858
        %2891 = vst [vmem:[%s163 + $0x88] sm:$0xff] %v2859
        %2892 = vst [vmem:[%s163 + $0x90] sm:$0xff] %v2860
        %2893 = vst [vmem:[%s163 + $0x98] sm:$0xff] %v2861
        %2894 = vst [vmem:[%s163 + $0xa0] sm:$0xff] %v2862
        %2895 = vst [vmem:[%s163 + $0xa8] sm:$0xff] %v2863
        %2896 = vst [vmem:[%s163 + $0xb0] sm:$0xff] %v2864
        %2897 = vst [vmem:[%s163 + $0xb8] sm:$0xff] %v2865
        %2898 = vst [vmem:[%s163 + $0xc0] sm:$0xff] %v2866
        %2899 = vst [vmem:[%s163 + $0xc8] sm:$0xff] %v2867
        %2900 = vst [vmem:[%s163 + $0xd0] sm:$0xff] %v2868
        %2901 = vst [vmem:[%s163 + $0xd8] sm:$0xff] %v2869
        %2902 = vst [vmem:[%s163 + $0xe0] sm:$0xff] %v2870
        %2903 = vst [vmem:[%s163 + $0xe8] sm:$0xff] %v2871
        %2904 = vst [vmem:[%s163 + $0xf0] sm:$0xff] %v2872
        %2905 = vst [vmem:[%s163 + $0xf8] sm:$0xff] %v2873
        %s2906 = sand.u32 %s93, 1
        %s2907 = scalar_lea.sflag [#allocation3], %s2906
        %s2908 = sand.u32 %s93, 1
        %s2909 = smul.addr %s2908, 256
        %s2910 = scalar_lea.vmem [#allocation2], %s2909
        // Predicated region
        $region33: #{tpu_custom_call.1} parent=31 // pred_check
          %p2911 = pneg %p103
        $region34: #{tpu_custom_call.1} parent=31 // pred_check_branch
          %2913 = sbr.rel (%p2911) target = $region36
        $region35: #{tpu_custom_call.1} parent=31 // pred_region
          %s2915 = ssub.s32 4096, 4096
          %2916 = vsyncadd %s2907, %s2915
          %s2917 = smul.addr %s17, 32
          %s2918 = smul.addr %s2917, 128
          %s2919 = scalar_lea.hbm %s3, %s2918
          %s2920 = sshll.u32 %s2910, 4
          %s2921 = int_to_ptr.vmem [resolvable:$true] %s2920
          %2926 = dma.vmem_to_hbm [thread:$0]  %s2921, 4096, %s2919, %s2907, 128, 128, 8
        $region36: #{tpu_custom_call.1} parent=31 // pred_fallthru
          _
      $region32: #{tpu_custom_call.1} parent=5 // pred_fallthru
        _
      %p2927 = scmp.le.s32.totalorder 2, %s12
      // Predicated region
      $region37: #{tpu_custom_call.1} parent=5 // pred_check
        %p2928 = pneg %p2927
      $region38: #{tpu_custom_call.1} parent=5 // pred_check_branch
        %2930 = sbr.rel (%p2928) target = $region40
      $region39: #{tpu_custom_call.1} parent=5 // pred_region
        %s2931 = ssub.s32 %s12, 2
        // Predicated region
        $region41: #{tpu_custom_call.1} parent=39 // pred_check
          %p2932 = pneg %p109
        $region42: #{tpu_custom_call.1} parent=39 // pred_check_branch
          %2934 = sbr.rel (%p2932) target = $region44
        $region43: #{tpu_custom_call.1} parent=39 // pred_region
          %s2935 = sand.u32 %s94, 1
          %s2936 = scalar_lea.sflag [#allocation3], %s2935
          %s2937 = sand.u32 %s94, 1
          %s2938 = smul.addr %s2937, 256
          %s2939 = scalar_lea.vmem [#allocation2], %s2938
          %2940 = dma.done %s2936, 4096
        $region44: #{tpu_custom_call.1} parent=39 // pred_fallthru
          _
      $region40: #{tpu_custom_call.1} parent=5 // pred_fallthru
        _
    $region6: #{tpu_custom_call.1} parent=1 // loop_footer
      %s16 = sadd.s32 1, %s12
    $region7: #{tpu_custom_call.1} parent=1 // loop_footer_branch
      %11 = sbr.rel target = $region3
    $region8: #{tpu_custom_call.1} parent=1 // loop_exit
      _
    %2941 = vsyncpa [#allocation3], 1
    %s2942 = scalar_lea.sflag [#allocation3], 1
    %2943 = vsyncpa %s2942, 1

</llo_original>
